<compile_context>
chip_gen: v7x
topology: tpu7x:2x2x1
jax: 0.10.0
libtpu: 0.0.40
codegen_flags: <defaults>
</compile_context>

<pallas_src>
import numpy as np

import jax
import jax.numpy as jnp
from jax.experimental import pallas as pl
from jax.experimental.pallas import tpu as pltpu

# ----- small synthetic configuration (mirrors temp_clip_length_eval = 8) -----
T, H, W = 8, 16, 16          # sequence length, spatial size
C_IN = 3                     # RGB input channels
C_FEAT = 32                  # image backbone feature channels
C_FLOW = 2                   # optical flow channels (u, v)
N_PARAMS = 16                # per-pixel regression parameters from the head
N_HEAD = 1 + N_PARAMS        # confidence + params
LANE = 128                   # lane-dense slab width for the single packed output
HEAD_OFF = C_FEAT + C_FLOW   # head outputs start at lane 34
K_ACT = 9 * C_IN + 2 * C_IN  # 33 contraction columns (im2col + frame pair)
K_PAD = 48                   # padded K (multiple of 16 for bf16 sublane packing)
TM = 512                     # row tile: T*H*W = 2048 -> grid=(4,), parallel (2 steps/TC on v7x)
EMA_ALPHA = 0.6              # temporal fusion coefficient


# --------------------------- Pallas kernel -----------------------------------
def _fused_trace_kernel(x_ref, wbf_ref, bbf_ref, relu_mask_ref,
                        wh_ref, bh_ref, sig_mask_ref, o_ref):
    """One row-tile of the fused backbone + flow + head pipeline.

    Stage 1 (one matmul): combined 3x3-conv backbone (im2col) and 1x1 flow conv.
      lanes 0:32  = backbone pre-activation   -> ReLU (column-masked)
      lanes 32:34 = flow (u, v)               -> untouched (signed)
    Head  (one matmul): 1x1 conv over [feats, flows] -> lanes 34:51, sigmoid on lane 34.
    All pad lanes are exactly zero and the two slabs occupy disjoint lanes, so the
    final pack is a single add and one unmasked 128-lane store.
    """
    z = jnp.dot(x_ref[...], wbf_ref[...],
                preferred_element_type=jnp.float32) + bbf_ref[...]
    stage1 = jnp.where(relu_mask_ref[...] > 0.5, jnp.maximum(z, 0.0), z)

    head = jnp.dot(stage1.astype(wh_ref.dtype), wh_ref[...],
                   preferred_element_type=jnp.float32) + bh_ref[...]
    # sigmoid only on the center/confidence lane (34) via a constant column mask;
    # the full-slab sigmoid runs on the otherwise-idle EUP slot (free filler).
    head = jnp.where(sig_mask_ref[...] > 0.5, jax.nn.sigmoid(head), head)

    o_ref[...] = (stage1 + head).astype(o_ref.dtype)


def fused_trace(x, pp):
    """x: (M, K_PAD) bf16 activations. Returns one packed (M, 128) bf16 slab."""
    M, K = x.shape
    assert M % TM == 0 and K == K_PAD
    return pl.pallas_call(
        _fused_trace_kernel,
        out_shape=jax.ShapeDtypeStruct((M, LANE), jnp.bfloat16),
        grid_spec=pltpu.PrefetchScalarGridSpec(
            num_scalar_prefetch=0,
            grid=(M // TM,),
            in_specs=[
                pl.BlockSpec((TM, K_PAD), lambda i: (i, 0)),     # [im2col | frame-pair] rows
                pl.BlockSpec((K_PAD, LANE), lambda i: (0, 0)),   # combined stage-1 weight
                pl.BlockSpec((1, LANE), lambda i: (0, 0)),       # combined stage-1 bias (f32)
                pl.BlockSpec((1, LANE), lambda i: (0, 0)),       # ReLU column mask (f32)
                pl.BlockSpec((LANE, LANE), lambda i: (0, 0)),    # head weight
                pl.BlockSpec((1, LANE), lambda i: (0, 0)),       # head bias (f32)
                pl.BlockSpec((1, LANE), lambda i: (0, 0)),       # sigmoid column mask (f32)
            ],
            out_specs=pl.BlockSpec((TM, LANE), lambda i: (i, 0)),
        ),
        compiler_params=pltpu.CompilerParams(
            dimension_semantics=("parallel",)),
    )(x, pp["wbf"], pp["bbf"], pp["relu_mask"], pp["wh"], pp["bh"], pp["sig_mask"])


# -------------------- hoisted constants / parameter prep ----------------------
def _ema_matrix_np(t):
    """(t, t+1) coefficients for carry_k = a*x_k + (1-a)*carry_{k-1}."""
    L = np.zeros((t, t + 1), np.float32)
    for i in range(t):
        L[i, 0] = (1.0 - EMA_ALPHA) ** (i + 1)
        for k in range(i + 1):
            L[i, k + 1] = EMA_ALPHA * (1.0 - EMA_ALPHA) ** (i - k)
    return L


# built once at module scope (review: don't rebuild the host double loop every call)
EMA_MATRIX = jnp.asarray(_ema_matrix_np(T))


def init_params(key):
    ks = jax.random.split(key, 6)

    def init(k, shape, scale):
        return jax.random.normal(k, shape, jnp.float32) * scale

    return {
        "w_backbone": init(ks[0], (9 * C_IN, C_FEAT), 0.1),
        "b_backbone": init(ks[1], (C_FEAT,), 0.01),
        "w_flow": init(ks[2], (2 * C_IN, C_FLOW), 0.1),
        "b_flow": init(ks[3], (C_FLOW,), 0.01),
        "w_head": init(ks[4], (C_FEAT + C_FLOW, N_HEAD), 0.1),
        "b_head": init(ks[5], (N_HEAD,), 0.01),
    }


def prepare_padded_params(params):
    """Run ONCE at init: pack weights into lane-dense, exactly-zero-padded slabs."""
    wbf = jnp.zeros((K_PAD, LANE), jnp.float32)
    wbf = wbf.at[0:9 * C_IN, 0:C_FEAT].set(params["w_backbone"])
    wbf = wbf.at[9 * C_IN:K_ACT, C_FEAT:HEAD_OFF].set(params["w_flow"])

    bbf = jnp.zeros((1, LANE), jnp.float32)
    bbf = bbf.at[0, 0:C_FEAT].set(params["b_backbone"])
    bbf = bbf.at[0, C_FEAT:HEAD_OFF].set(params["b_flow"])

    relu_mask = jnp.zeros((1, LANE), jnp.float32).at[0, 0:C_FEAT].set(1.0)

    wh = jnp.zeros((LANE, LANE), jnp.float32)
    wh = wh.at[0:HEAD_OFF, HEAD_OFF:HEAD_OFF + N_HEAD].set(params["w_head"])

    bh = jnp.zeros((1, LANE), jnp.float32)
    bh = bh.at[0, HEAD_OFF:HEAD_OFF + N_HEAD].set(params["b_head"])

    sig_mask = jnp.zeros((1, LANE), jnp.float32).at[0, HEAD_OFF].set(1.0)

    return {"wbf": wbf.astype(jnp.bfloat16), "bbf": bbf, "relu_mask": relu_mask,
            "wh": wh.astype(jnp.bfloat16), "bh": bh, "sig_mask": sig_mask}


# ------------------------------ JAX glue --------------------------------------
def im2col_3x3(x):
    """x: (T, H, W, C) -> (T, H, W, 9*C), zero padding = 1 (same as 3x3 conv pad=1)."""
    t, h, w, c = x.shape
    xp = jnp.pad(x, ((0, 0), (1, 1), (1, 1), (0, 0)))
    patches = [xp[:, dy:dy + h, dx:dx + w, :] for dy in range(3) for dx in range(3)]
    return jnp.concatenate(patches, axis=-1)


def trace_forward(images, padded_params, prev_image=None, prev_temp_state=None):
    """Synthetic TRACE.sequence_inference compute path.

    images: (T, H, W, 3) float32, NHWC.
    Returns (outputs dict, temp_states dict) mirroring temp_head_forward's carry.
    """
    t, h, w, c = images.shape
    M = t * h * w

    # im2col for the 3x3 backbone stem
    cols = im2col_3x3(images).reshape(M, 9 * c)

    # insert_last_human_state: prepend cached last frame (or frame 0 on cold start)
    if prev_image is None:
        prev_image = images[0]
    padded = jnp.concatenate([prev_image[None], images], axis=0)        # (T+1, H, W, 3)
    pair = jnp.concatenate([padded[:-1], padded[1:]], axis=-1).reshape(M, 2 * c)

    # single activation stream: [im2col | frame-pair], zero-padded K, bf16 into the MXU
    x = jnp.concatenate([cols, pair], axis=-1)                          # (M, 33)
    x = jnp.pad(x, ((0, 0), (0, K_PAD - K_ACT))).astype(jnp.bfloat16)   # (M, 48)

    # fused backbone + flow + head: one Pallas call, one packed 128-lane output slab
    slab = fused_trace(x, padded_params)                                # (M, 128) bf16
    feats = slab[:, 0:C_FEAT].reshape(t, h, w, C_FEAT)
    flows = slab[:, C_FEAT:HEAD_OFF].reshape(t, h, w, C_FLOW)
    center_maps = slab[:, HEAD_OFF].astype(jnp.float32).reshape(t, h * w)
    param_maps = slab[:, HEAD_OFF + 1:HEAD_OFF + 1 + N_PARAMS].reshape(t, h, w, N_PARAMS)

    # causal temporal fusion of center maps with the cached temp_state: closed-form
    # L @ [state; x] as a plain jnp.dot (a separate pallas_call was pure dispatch cost).
    # TODO(synk): real TRACE may seed temp_state with the first observation, not zeros.
    if prev_temp_state is None:
        prev_temp_state = jnp.zeros((1, h * w), jnp.float32)
    x_aug = jnp.concatenate([prev_temp_state, center_maps], axis=0)     # (T+1, HW)
    center_smooth = jnp.dot(EMA_MATRIX, x_aug)                          # (T, HW)
    new_temp_state = center_smooth[-1:]                                 # (1, HW)
    center_smooth = center_smooth.reshape(t, h, w)

    outputs = {
        "image_feature_maps": feats,
        "optical_flows": flows,
        "center_maps": center_smooth,
        "params_maps": param_maps,
    }
    temp_states = {"center_ema": new_temp_state, "last_image": images[-1]}
    return outputs, temp_states


if __name__ == "__main__":
    key = jax.random.PRNGKey(0)
    k_img, k_par = jax.random.split(key)
    images = jax.random.uniform(k_img, (T, H, W, C_IN), jnp.float32)
    params = init_params(k_par)
    padded_params = prepare_padded_params(params)   # once at init, not per forward

    outputs, temp_states = trace_forward(images, padded_params)
    jax.block_until_ready(outputs["center_maps"])
    jax.block_until_ready(outputs["params_maps"])
    jax.block_until_ready(temp_states["center_ema"])

    assert outputs["image_feature_maps"].shape == (T, H, W, C_FEAT)
    assert outputs["optical_flows"].shape == (T, H, W, C_FLOW)
    assert outputs["center_maps"].shape == (T, H, W)
    assert outputs["params_maps"].shape == (T, H, W, N_PARAMS)
    print("KERNEL_OK")
</pallas_src>

<mosaic_0001>
module attributes {stable_mosaic.version = 11 : i64} {
  func.func @_fused_trace_kernel(%arg0: i32, %arg1: memref<512x48xbf16, #tpu.memory_space<vmem>>, %arg2: memref<48x128xbf16, #tpu.memory_space<vmem>>, %arg3: memref<1x128xf32, #tpu.memory_space<vmem>>, %arg4: memref<1x128xf32, #tpu.memory_space<vmem>>, %arg5: memref<128x128xbf16, #tpu.memory_space<vmem>>, %arg6: memref<1x128xf32, #tpu.memory_space<vmem>>, %arg7: memref<1x128xf32, #tpu.memory_space<vmem>>, %arg8: memref<512x128xbf16, #tpu.memory_space<vmem>>) attributes {dimension_semantics = [#tpu.dimension_semantics<parallel>], iteration_bounds = array<i64: 4>, scalar_prefetch = 0 : i64, scratch_operands = 0 : i64, tpu.core_type = #tpu.core_type<tc>, window_params = [{transform_indices = @transform_0, window_bounds = array<i64: 512, 48>}, {pipeline_mode = #tpu.pipeline_mode<synchronous>, transform_indices = @transform_1, window_bounds = array<i64: 48, 128>}, {pipeline_mode = #tpu.pipeline_mode<synchronous>, transform_indices = @transform_2, window_bounds = array<i64: 1, 128>}, {pipeline_mode = #tpu.pipeline_mode<synchronous>, transform_indices = @transform_3, window_bounds = array<i64: 1, 128>}, {pipeline_mode = #tpu.pipeline_mode<synchronous>, transform_indices = @transform_4, window_bounds = array<i64: 128, 128>}, {pipeline_mode = #tpu.pipeline_mode<synchronous>, transform_indices = @transform_5, window_bounds = array<i64: 1, 128>}, {pipeline_mode = #tpu.pipeline_mode<synchronous>, transform_indices = @transform_6, window_bounds = array<i64: 1, 128>}, {transform_indices = @transform_7, window_bounds = array<i64: 512, 128>}]} {
    %c0 = arith.constant 0 : index
    %c0_0 = arith.constant 0 : index
    %0 = vector.load %arg1[%c0, %c0_0] : memref<512x48xbf16, #tpu.memory_space<vmem>>, vector<512x48xbf16>
    %c0_1 = arith.constant 0 : index
    %c0_2 = arith.constant 0 : index
    %1 = vector.load %arg2[%c0_1, %c0_2] : memref<48x128xbf16, #tpu.memory_space<vmem>>, vector<48x128xbf16>
    %cst = arith.constant dense<0.000000e+00> : vector<512x128xf32>
    %2 = tpu.matmul %0, %1, %cst {dimension_numbers = #tpu.dot_dimension_numbers<[1], [0], [0], [1], [0, 0, 1, 1], [], []>} : vector<512x48xbf16>, vector<48x128xbf16>, vector<512x128xf32> -> vector<512x128xf32>
    %c0_3 = arith.constant 0 : index
    %c0_4 = arith.constant 0 : index
    %3 = vector.load %arg3[%c0_3, %c0_4] : memref<1x128xf32, #tpu.memory_space<vmem>>, vector<1x128xf32>
    %4 = vector.broadcast %3 : vector<1x128xf32> to vector<512x128xf32>
    %5 = arith.addf %2, %4 : vector<512x128xf32>
    %c0_5 = arith.constant 0 : index
    %c0_6 = arith.constant 0 : index
    %6 = vector.load %arg4[%c0_5, %c0_6] : memref<1x128xf32, #tpu.memory_space<vmem>>, vector<1x128xf32>
    %cst_7 = arith.constant 5.000000e-01 : f32
    %7 = vector.broadcast %cst_7 : f32 to vector<1x128xf32>
    %8 = arith.cmpf ogt, %6, %7 : vector<1x128xf32>
    %cst_8 = arith.constant 0.000000e+00 : f32
    %9 = vector.broadcast %cst_8 : f32 to vector<512x128xf32>
    %10 = arith.maximumf %5, %9 : vector<512x128xf32>
    %11 = vector.shape_cast %8 : vector<1x128xi1> to vector<1x128xi1>
    %12 = vector.broadcast %11 : vector<1x128xi1> to vector<512x128xi1>
    %13 = arith.select %12, %10, %5 : vector<512x128xi1>, vector<512x128xf32>
    %14 = arith.truncf %13 : vector<512x128xf32> to vector<512x128xbf16>
    %c0_9 = arith.constant 0 : index
    %c0_10 = arith.constant 0 : index
    %15 = vector.load %arg5[%c0_9, %c0_10] : memref<128x128xbf16, #tpu.memory_space<vmem>>, vector<128x128xbf16>
    %cst_11 = arith.constant dense<0.000000e+00> : vector<512x128xf32>
    %16 = tpu.matmul %14, %15, %cst_11 {dimension_numbers = #tpu.dot_dimension_numbers<[1], [0], [0], [1], [0, 0, 1, 1], [], []>} : vector<512x128xbf16>, vector<128x128xbf16>, vector<512x128xf32> -> vector<512x128xf32>
    %c0_12 = arith.constant 0 : index
    %c0_13 = arith.constant 0 : index
    %17 = vector.load %arg6[%c0_12, %c0_13] : memref<1x128xf32, #tpu.memory_space<vmem>>, vector<1x128xf32>
    %18 = vector.broadcast %17 : vector<1x128xf32> to vector<512x128xf32>
    %19 = arith.addf %16, %18 : vector<512x128xf32>
    %c0_14 = arith.constant 0 : index
    %c0_15 = arith.constant 0 : index
    %20 = vector.load %arg7[%c0_14, %c0_15] : memref<1x128xf32, #tpu.memory_space<vmem>>, vector<1x128xf32>
    %cst_16 = arith.constant 5.000000e-01 : f32
    %21 = vector.broadcast %cst_16 : f32 to vector<1x128xf32>
    %22 = arith.cmpf ogt, %20, %21 : vector<1x128xf32>
    %23 = arith.negf %19 : vector<512x128xf32>
    %24 = math.exp %23 : vector<512x128xf32>
    %cst_17 = arith.constant 1.000000e+00 : f32
    %25 = vector.broadcast %cst_17 : f32 to vector<512x128xf32>
    %26 = arith.addf %25, %24 : vector<512x128xf32>
    %27 = arith.divf %25, %26 : vector<512x128xf32>
    %28 = vector.shape_cast %22 : vector<1x128xi1> to vector<1x128xi1>
    %29 = vector.broadcast %28 : vector<1x128xi1> to vector<512x128xi1>
    %30 = arith.select %29, %27, %19 : vector<512x128xi1>, vector<512x128xf32>
    %31 = arith.addf %13, %30 : vector<512x128xf32>
    %32 = arith.truncf %31 : vector<512x128xf32> to vector<512x128xbf16>
    %c0_18 = arith.constant 0 : index
    %c0_19 = arith.constant 0 : index
    %33 = vector.load %arg8[%c0_18, %c0_19] : memref<512x128xbf16, #tpu.memory_space<vmem>>, vector<512x128xbf16>
    tpu.vector_store %arg8[%c0_18, %c0_19], %32 {strides = array<i32>} : memref<512x128xbf16, #tpu.memory_space<vmem>>, vector<512x128xbf16>,
    return
  }
  func.func @transform_0(%arg0: i32) -> (i32, i32) {
    %c0_i32 = arith.constant 0 : i32
    %c0_i32_0 = arith.constant 0 : i32
    return %arg0, %c0_i32 : i32, i32
  }
  func.func @transform_1(%arg0: i32) -> (i32, i32) {
    %c0_i32 = arith.constant 0 : i32
    %c0_i32_0 = arith.constant 0 : i32
    %c0_i32_1 = arith.constant 0 : i32
    return %c0_i32, %c0_i32_0 : i32, i32
  }
  func.func @transform_2(%arg0: i32) -> (i32, i32) {
    %c0_i32 = arith.constant 0 : i32
    %c0_i32_0 = arith.constant 0 : i32
    %c0_i32_1 = arith.constant 0 : i32
    return %c0_i32, %c0_i32_0 : i32, i32
  }
  func.func @transform_3(%arg0: i32) -> (i32, i32) {
    %c0_i32 = arith.constant 0 : i32
    %c0_i32_0 = arith.constant 0 : i32
    %c0_i32_1 = arith.constant 0 : i32
    return %c0_i32, %c0_i32_0 : i32, i32
  }
  func.func @transform_4(%arg0: i32) -> (i32, i32) {
    %c0_i32 = arith.constant 0 : i32
    %c0_i32_0 = arith.constant 0 : i32
    %c0_i32_1 = arith.constant 0 : i32
    return %c0_i32, %c0_i32_0 : i32, i32
  }
  func.func @transform_5(%arg0: i32) -> (i32, i32) {
    %c0_i32 = arith.constant 0 : i32
    %c0_i32_0 = arith.constant 0 : i32
    %c0_i32_1 = arith.constant 0 : i32
    return %c0_i32, %c0_i32_0 : i32, i32
  }
  func.func @transform_6(%arg0: i32) -> (i32, i32) {
    %c0_i32 = arith.constant 0 : i32
    %c0_i32_0 = arith.constant 0 : i32
    %c0_i32_1 = arith.constant 0 : i32
    return %c0_i32, %c0_i32_0 : i32, i32
  }
  func.func @transform_7(%arg0: i32) -> (i32, i32) {
    %c0_i32 = arith.constant 0 : i32
    %c0_i32_0 = arith.constant 0 : i32
    return %arg0, %c0_i32 : i32, i32
  }
}

</mosaic_0001>

<llo_original>
// kernel: tpu_custom_call.1
$region0: #{tpu_custom_call.1}
  #allocation0 [shape = 'u32[]', space=smem, size = 0x4, offset = 0x4, fixed_abs, tag = 'smem constant byte address 0x4 - core index']
  #allocation1 [shape = 'u32[144,128]{1,0:T(1,128)}', space=vmem, size = 0x12000, scoped, tag = 'internal scratch']
  %s0 = inlined_call_operand.vmem [shape: bf16[2048,48], index: 0, kind: input, shape index: {}]
  %s1 = inlined_call_operand.vmem [shape: bf16[48,128], index: 1, kind: input, shape index: {}]
  %s2 = inlined_call_operand.vmem [shape: f32[1,128], index: 2, kind: input, shape index: {}]
  %s3 = inlined_call_operand.vmem [shape: f32[1,128], index: 3, kind: input, shape index: {}]
  %s4 = inlined_call_operand.vmem [shape: bf16[128,128], index: 4, kind: input, shape index: {}]
  %s5 = inlined_call_operand.vmem [shape: f32[1,128], index: 5, kind: input, shape index: {}]
  %s6 = inlined_call_operand.vmem [shape: f32[1,128], index: 6, kind: input, shape index: {}]
  %s7 = inlined_call_operand.hbm [shape: bf16[2048,128], index: 7, kind: output, shape index: {}]
  %s8 = sld [smem:[#allocation0]]
  $region61: #{tpu_custom_call.1} parent=0
    _
  %s10 = ssub.s32 1, %s8
  %s11 = scalar_select 0, %s10, %s8
  $region1: #{tpu_custom_call.1} parent=0
    #allocation2 [shape = 'u8[262144]{0}', space=vmem, size = 0x40000, scoped, tag = 'output window, operand 0']
    #allocation3 [shape = 's32[2]{0}', space=sflag, size = 0x8, scoped, tag = 'scoped memory for tpu_custom_call.1']
    %12 = vsyncpa [#allocation3], 0
    %s13 = scalar_lea.sflag [#allocation3], 1
    %14 = vsyncpa %s13, 0
    loop: start=0, step=1, limit=6
    $region2: #{tpu_custom_call.1} parent=1 // loop_pre_header
      _
    $region3: #{tpu_custom_call.1} parent=1 // loop_header
      %s16 = sphi 0, %s20
      %p17 = scmp.ge.s32.totalorder %s16, 6
      %s26 = sphi 0, %s28
      %s29 = sphi 0, %s26
      %s30 = sphi 0, %s29
      %s46 = sphi 0, %s30
      %s50 = sphi 0, %s50
      %s52 = sphi 0, %s50
      %s53 = sphi 0, %s52
      %s67 = sphi 0, %s53
      %s71 = sphi 0, %s71
      %s73 = sphi 0, %s71
      %s74 = sphi 0, %s73
      %s88 = sphi 0, %s74
      %s92 = sphi 0, %s92
      %s94 = sphi 0, %s92
      %s95 = sphi 0, %s94
      %s109 = sphi 0, %s95
      %s113 = sphi 0, %s113
      %s115 = sphi 0, %s113
      %s116 = sphi 0, %s115
      %s130 = sphi 0, %s116
      %s134 = sphi 0, %s134
      %s136 = sphi 0, %s134
      %s137 = sphi 0, %s136
      %s151 = sphi 0, %s137
      %s155 = sphi 0, %s155
      %s157 = sphi 0, %s155
      %s158 = sphi 0, %s157
      %s172 = sphi 0, %s158
      %s178 = sphi 0, %s180
      %s181 = sphi 0, %s178
      %s182 = sphi 0, %s181
      %s198 = sphi 0, %s182
    $region4: #{tpu_custom_call.1} parent=1 // loop_header_branch
      %19 = sbr.rel (%p17) target = $region8
    $region5: #{tpu_custom_call.1} parent=1 // loop_body
      %s21 = ssub.s32 %s16, 1
      %s22 = ssub.s32 %s16, 2
      %s23 = sadd.s32 %s16, 1
      %s24 = ssub.s32 %s16, %s23
      %p25 = scmp.eq.s32.totalorder %s24, 0
      %s27 = sadd.s32 %s26, 1
      %s28 = scalar_select %p25, %s26, %s27
      %p31 = pneg %p25
      %p32 = scmp.eq.s32.totalorder %s16, 3
      %p33 = por %p31, %p32
      %p34 = scmp.ne.s32.totalorder %s26, %s29
      %p35 = scmp.eq.s32.totalorder %s16, 0
      %p36 = por %p34, %p35
      %p37 = scmp.ne.s32.totalorder %s26, %s29
      %p38 = scmp.eq.s32.totalorder %s21, 3
      %p39 = por %p37, %p38
      %p40 = scmp.ne.s32.totalorder %s29, %s30
      %p41 = scmp.eq.s32.totalorder %s21, 0
      %p42 = por %p40, %p41
      %p43 = scmp.ne.s32.totalorder %s29, %s30
      %p44 = scmp.eq.s32.totalorder %s22, 3
      %p45 = por %p43, %p44
      %p47 = scmp.ne.s32.totalorder %s30, %s46
      %p48 = scmp.eq.s32.totalorder %s22, 0
      %p49 = por %p47, %p48
      %s51 = sadd.s32 %s50, 1
      %p54 = scmp.eq.s32.totalorder %s16, 3
      %p55 = scmp.ne.s32.totalorder %s50, %s52
      %p56 = scmp.eq.s32.totalorder %s16, 0
      %p57 = por %p55, %p56
      %p58 = scmp.ne.s32.totalorder %s50, %s52
      %p59 = scmp.eq.s32.totalorder %s21, 3
      %p60 = por %p58, %p59
      %p61 = scmp.ne.s32.totalorder %s52, %s53
      %p62 = scmp.eq.s32.totalorder %s21, 0
      %p63 = por %p61, %p62
      %p64 = scmp.ne.s32.totalorder %s52, %s53
      %p65 = scmp.eq.s32.totalorder %s22, 3
      %p66 = por %p64, %p65
      %p68 = scmp.ne.s32.totalorder %s53, %s67
      %p69 = scmp.eq.s32.totalorder %s22, 0
      %p70 = por %p68, %p69
      %s72 = sadd.s32 %s71, 1
      %p75 = scmp.eq.s32.totalorder %s16, 3
      %p76 = scmp.ne.s32.totalorder %s71, %s73
      %p77 = scmp.eq.s32.totalorder %s16, 0
      %p78 = por %p76, %p77
      %p79 = scmp.ne.s32.totalorder %s71, %s73
      %p80 = scmp.eq.s32.totalorder %s21, 3
      %p81 = por %p79, %p80
      %p82 = scmp.ne.s32.totalorder %s73, %s74
      %p83 = scmp.eq.s32.totalorder %s21, 0
      %p84 = por %p82, %p83
      %p85 = scmp.ne.s32.totalorder %s73, %s74
      %p86 = scmp.eq.s32.totalorder %s22, 3
      %p87 = por %p85, %p86
      %p89 = scmp.ne.s32.totalorder %s74, %s88
      %p90 = scmp.eq.s32.totalorder %s22, 0
      %p91 = por %p89, %p90
      %s93 = sadd.s32 %s92, 1
      %p96 = scmp.eq.s32.totalorder %s16, 3
      %p97 = scmp.ne.s32.totalorder %s92, %s94
      %p98 = scmp.eq.s32.totalorder %s16, 0
      %p99 = por %p97, %p98
      %p100 = scmp.ne.s32.totalorder %s92, %s94
      %p101 = scmp.eq.s32.totalorder %s21, 3
      %p102 = por %p100, %p101
      %p103 = scmp.ne.s32.totalorder %s94, %s95
      %p104 = scmp.eq.s32.totalorder %s21, 0
      %p105 = por %p103, %p104
      %p106 = scmp.ne.s32.totalorder %s94, %s95
      %p107 = scmp.eq.s32.totalorder %s22, 3
      %p108 = por %p106, %p107
      %p110 = scmp.ne.s32.totalorder %s95, %s109
      %p111 = scmp.eq.s32.totalorder %s22, 0
      %p112 = por %p110, %p111
      %s114 = sadd.s32 %s113, 1
      %p117 = scmp.eq.s32.totalorder %s16, 3
      %p118 = scmp.ne.s32.totalorder %s113, %s115
      %p119 = scmp.eq.s32.totalorder %s16, 0
      %p120 = por %p118, %p119
      %p121 = scmp.ne.s32.totalorder %s113, %s115
      %p122 = scmp.eq.s32.totalorder %s21, 3
      %p123 = por %p121, %p122
      %p124 = scmp.ne.s32.totalorder %s115, %s116
      %p125 = scmp.eq.s32.totalorder %s21, 0
      %p126 = por %p124, %p125
      %p127 = scmp.ne.s32.totalorder %s115, %s116
      %p128 = scmp.eq.s32.totalorder %s22, 3
      %p129 = por %p127, %p128
      %p131 = scmp.ne.s32.totalorder %s116, %s130
      %p132 = scmp.eq.s32.totalorder %s22, 0
      %p133 = por %p131, %p132
      %s135 = sadd.s32 %s134, 1
      %p138 = scmp.eq.s32.totalorder %s16, 3
      %p139 = scmp.ne.s32.totalorder %s134, %s136
      %p140 = scmp.eq.s32.totalorder %s16, 0
      %p141 = por %p139, %p140
      %p142 = scmp.ne.s32.totalorder %s134, %s136
      %p143 = scmp.eq.s32.totalorder %s21, 3
      %p144 = por %p142, %p143
      %p145 = scmp.ne.s32.totalorder %s136, %s137
      %p146 = scmp.eq.s32.totalorder %s21, 0
      %p147 = por %p145, %p146
      %p148 = scmp.ne.s32.totalorder %s136, %s137
      %p149 = scmp.eq.s32.totalorder %s22, 3
      %p150 = por %p148, %p149
      %p152 = scmp.ne.s32.totalorder %s137, %s151
      %p153 = scmp.eq.s32.totalorder %s22, 0
      %p154 = por %p152, %p153
      %s156 = sadd.s32 %s155, 1
      %p159 = scmp.eq.s32.totalorder %s16, 3
      %p160 = scmp.ne.s32.totalorder %s155, %s157
      %p161 = scmp.eq.s32.totalorder %s16, 0
      %p162 = por %p160, %p161
      %p163 = scmp.ne.s32.totalorder %s155, %s157
      %p164 = scmp.eq.s32.totalorder %s21, 3
      %p165 = por %p163, %p164
      %p166 = scmp.ne.s32.totalorder %s157, %s158
      %p167 = scmp.eq.s32.totalorder %s21, 0
      %p168 = por %p166, %p167
      %p169 = scmp.ne.s32.totalorder %s157, %s158
      %p170 = scmp.eq.s32.totalorder %s22, 3
      %p171 = por %p169, %p170
      %p173 = scmp.ne.s32.totalorder %s158, %s172
      %p174 = scmp.eq.s32.totalorder %s22, 0
      %p175 = por %p173, %p174
      %s176 = ssub.s32 %s16, %s23
      %p177 = scmp.eq.s32.totalorder %s176, 0
      %s179 = sadd.s32 %s178, 1
      %s180 = scalar_select %p177, %s178, %s179
      %p183 = pneg %p177
      %p184 = scmp.eq.s32.totalorder %s16, 3
      %p185 = por %p183, %p184
      %p186 = scmp.ne.s32.totalorder %s178, %s181
      %p187 = scmp.eq.s32.totalorder %s16, 0
      %p188 = por %p186, %p187
      %p189 = scmp.ne.s32.totalorder %s178, %s181
      %p190 = scmp.eq.s32.totalorder %s21, 3
      %p191 = por %p189, %p190
      %p192 = scmp.ne.s32.totalorder %s181, %s182
      %p193 = scmp.eq.s32.totalorder %s21, 0
      %p194 = por %p192, %p193
      %p195 = scmp.ne.s32.totalorder %s181, %s182
      %p196 = scmp.eq.s32.totalorder %s22, 3
      %p197 = por %p195, %p196
      %p199 = scmp.ne.s32.totalorder %s182, %s198
      %p200 = scmp.eq.s32.totalorder %s22, 0
      %p201 = por %p199, %p200
      %p202 = scmp.le.s32.totalorder 1, %s16
      %p203 = scmp.lt.s32.totalorder %s16, 5
      %p204 = pnand %p202, %p203
      %p205 = pneg %p204
      // Predicated region
      $region9: #{tpu_custom_call.1} parent=5 // pred_check
        _
      $region10: #{tpu_custom_call.1} parent=5 // pred_check_branch
        %207 = sbr.rel (%p204) target = $region12
      $region11: #{tpu_custom_call.1} parent=5 // pred_region
        %s208 = ssub.s32 %s16, 1
        // Predicated region
        $region13: #{tpu_custom_call.1} parent=11 // pred_check
          %p209 = pneg %p63
        $region14: #{tpu_custom_call.1} parent=11 // pred_check_branch
          %211 = sbr.rel (%p209) target = $region16
        $region15: #{tpu_custom_call.1} parent=11 // pred_region
          _
        $region16: #{tpu_custom_call.1} parent=11 // pred_fallthru
          _
        // Predicated region
        $region17: #{tpu_custom_call.1} parent=11 // pred_check
          %p212 = pneg %p84
        $region18: #{tpu_custom_call.1} parent=11 // pred_check_branch
          %214 = sbr.rel (%p212) target = $region20
        $region19: #{tpu_custom_call.1} parent=11 // pred_region
          _
        $region20: #{tpu_custom_call.1} parent=11 // pred_fallthru
          _
        // Predicated region
        $region21: #{tpu_custom_call.1} parent=11 // pred_check
          %p215 = pneg %p105
        $region22: #{tpu_custom_call.1} parent=11 // pred_check_branch
          %217 = sbr.rel (%p215) target = $region24
        $region23: #{tpu_custom_call.1} parent=11 // pred_region
          _
        $region24: #{tpu_custom_call.1} parent=11 // pred_fallthru
          _
        // Predicated region
        $region25: #{tpu_custom_call.1} parent=11 // pred_check
          %p218 = pneg %p126
        $region26: #{tpu_custom_call.1} parent=11 // pred_check_branch
          %220 = sbr.rel (%p218) target = $region28
        $region27: #{tpu_custom_call.1} parent=11 // pred_region
          _
        $region28: #{tpu_custom_call.1} parent=11 // pred_fallthru
          _
        // Predicated region
        $region29: #{tpu_custom_call.1} parent=11 // pred_check
          %p221 = pneg %p147
        $region30: #{tpu_custom_call.1} parent=11 // pred_check_branch
          %223 = sbr.rel (%p221) target = $region32
        $region31: #{tpu_custom_call.1} parent=11 // pred_region
          _
        $region32: #{tpu_custom_call.1} parent=11 // pred_fallthru
          _
        // Predicated region
        $region33: #{tpu_custom_call.1} parent=11 // pred_check
          %p224 = pneg %p168
        $region34: #{tpu_custom_call.1} parent=11 // pred_check_branch
          %226 = sbr.rel (%p224) target = $region36
        $region35: #{tpu_custom_call.1} parent=11 // pred_region
          _
        $region36: #{tpu_custom_call.1} parent=11 // pred_fallthru
          _
      $region12: #{tpu_custom_call.1} parent=5 // pred_fallthru
        _
      %p227 = scmp.lt.s32.totalorder %s16, 4
      // Predicated region
      $region37: #{tpu_custom_call.1} parent=5 // pred_check
        %p228 = pneg %p227
      $region38: #{tpu_custom_call.1} parent=5 // pred_check_branch
        %230 = sbr.rel (%p228) target = $region40
      $region39: #{tpu_custom_call.1} parent=5 // pred_region
        // Predicated region
        $region41: #{tpu_custom_call.1} parent=39 // pred_check
          %p231 = pneg %p36
        $region42: #{tpu_custom_call.1} parent=39 // pred_check_branch
          %233 = sbr.rel (%p231) target = $region44
        $region43: #{tpu_custom_call.1} parent=39 // pred_region
          %s234 = smul.u32 64, %s16
          %p235 = scmp.lt.s32.totalorder %s234, 255
          %s236 = scalar_select %p235, %s234, 255
          %s237 = smul.addr %s236, 4
          %s238 = scalar_lea.vmem %s0, %s237
          %s239 = smul.u32 64, %s16
        $region44: #{tpu_custom_call.1} parent=39 // pred_fallthru
          _
      $region40: #{tpu_custom_call.1} parent=5 // pred_fallthru
        _
      %p240 = scmp.le.s32.totalorder 1, %s16
      %p241 = scmp.lt.s32.totalorder %s16, 5
      %p242 = pnand %p240, %p241
      %p243 = pneg %p242
      // Predicated region
      $region45: #{tpu_custom_call.1} parent=5 // pred_check
        _
      $region46: #{tpu_custom_call.1} parent=5 // pred_check_branch
        %245 = sbr.rel (%p242) target = $region48
      $region47: #{tpu_custom_call.1} parent=5 // pred_region
        %s246 = ssub.s32 %s16, 1
        %s247 = smul.u32 64, %s21
        %p248 = scmp.lt.s32.totalorder %s247, 255
        %s249 = scalar_select %p248, %s247, 255
        %s250 = smul.addr %s249, 4
        %s251 = scalar_lea.vmem %s0, %s250
        %p252 = pneg %p42
        %p253 = pneg %p39
        %p254 = pneg %p63
        %p255 = pneg %p60
        %p256 = pneg %p84
        %p257 = pneg %p81
        %p258 = pneg %p105
        %p259 = pneg %p102
        %p260 = pneg %p126
        %p261 = pneg %p123
        %p262 = pneg %p147
        %p263 = pneg %p144
        %p264 = pneg %p168
        %p265 = pneg %p165
        %p266 = pneg %p194
        %p267 = pneg %p191
        %s268 = sand.u32 %s181, 1
        %s269 = scalar_lea.sflag [#allocation3], %s268
        %s270 = sand.u32 %s181, 1
        %s271 = smul.addr %s270, 256
        %s272 = scalar_lea.vmem [#allocation2], %s271
        %s273 = smul.u32 64, %s21
        %p274 = scmp.lt.s32.totalorder %s273, 255
        %s275 = scalar_select %p274, %s273, 255
        %s276 = smul.addr %s275, 4
        %s277 = scalar_lea.vmem %s0, %s276
        %s278 = smul.u32 64, %s21
        %s279 = smul.u32 64, %s21
        %v281 = vld [vmem:[%s277] sm:$0xf]
        %v282 = vld [vmem:[%s277 + $0x4] sm:$0xf]
        %v283 = vld [vmem:[%s277 + $0x8] sm:$0xf]
        %v284 = vld [vmem:[%s277 + $0xc] sm:$0xf]
        %v285 = vld [vmem:[%s277 + $0x10] sm:$0xf]
        %v286 = vld [vmem:[%s277 + $0x14] sm:$0xf]
        %v287 = vld [vmem:[%s277 + $0x18] sm:$0xf]
        %v288 = vld [vmem:[%s277 + $0x1c] sm:$0xf]
        %v289 = vld [vmem:[%s277 + $0x20] sm:$0xf]
        %v290 = vld [vmem:[%s277 + $0x24] sm:$0xf]
        %v291 = vld [vmem:[%s277 + $0x28] sm:$0xf]
        %v292 = vld [vmem:[%s277 + $0x2c] sm:$0xf]
        %v293 = vld [vmem:[%s277 + $0x30] sm:$0xf]
        %v294 = vld [vmem:[%s277 + $0x34] sm:$0xf]
        %v295 = vld [vmem:[%s277 + $0x38] sm:$0xf]
        %v296 = vld [vmem:[%s277 + $0x3c] sm:$0xf]
        %v297 = vld [vmem:[%s277 + $0x40] sm:$0xf]
        %v298 = vld [vmem:[%s277 + $0x44] sm:$0xf]
        %v299 = vld [vmem:[%s277 + $0x48] sm:$0xf]
        %v300 = vld [vmem:[%s277 + $0x4c] sm:$0xf]
        %v301 = vld [vmem:[%s277 + $0x50] sm:$0xf]
        %v302 = vld [vmem:[%s277 + $0x54] sm:$0xf]
        %v303 = vld [vmem:[%s277 + $0x58] sm:$0xf]
        %v304 = vld [vmem:[%s277 + $0x5c] sm:$0xf]
        %v305 = vld [vmem:[%s277 + $0x60] sm:$0xf]
        %v306 = vld [vmem:[%s277 + $0x64] sm:$0xf]
        %v307 = vld [vmem:[%s277 + $0x68] sm:$0xf]
        %v308 = vld [vmem:[%s277 + $0x6c] sm:$0xf]
        %v309 = vld [vmem:[%s277 + $0x70] sm:$0xf]
        %v310 = vld [vmem:[%s277 + $0x74] sm:$0xf]
        %v311 = vld [vmem:[%s277 + $0x78] sm:$0xf]
        %v312 = vld [vmem:[%s277 + $0x7c] sm:$0xf]
        %v313 = vld [vmem:[%s277 + $0x80] sm:$0xf]
        %v314 = vld [vmem:[%s277 + $0x84] sm:$0xf]
        %v315 = vld [vmem:[%s277 + $0x88] sm:$0xf]
        %v316 = vld [vmem:[%s277 + $0x8c] sm:$0xf]
        %v317 = vld [vmem:[%s277 + $0x90] sm:$0xf]
        %v318 = vld [vmem:[%s277 + $0x94] sm:$0xf]
        %v319 = vld [vmem:[%s277 + $0x98] sm:$0xf]
        %v320 = vld [vmem:[%s277 + $0x9c] sm:$0xf]
        %v321 = vld [vmem:[%s277 + $0xa0] sm:$0xf]
        %v322 = vld [vmem:[%s277 + $0xa4] sm:$0xf]
        %v323 = vld [vmem:[%s277 + $0xa8] sm:$0xf]
        %v324 = vld [vmem:[%s277 + $0xac] sm:$0xf]
        %v325 = vld [vmem:[%s277 + $0xb0] sm:$0xf]
        %v326 = vld [vmem:[%s277 + $0xb4] sm:$0xf]
        %v327 = vld [vmem:[%s277 + $0xb8] sm:$0xf]
        %v328 = vld [vmem:[%s277 + $0xbc] sm:$0xf]
        %v329 = vld [vmem:[%s277 + $0xc0] sm:$0xf]
        %v330 = vld [vmem:[%s277 + $0xc4] sm:$0xf]
        %v331 = vld [vmem:[%s277 + $0xc8] sm:$0xf]
        %v332 = vld [vmem:[%s277 + $0xcc] sm:$0xf]
        %v333 = vld [vmem:[%s277 + $0xd0] sm:$0xf]
        %v334 = vld [vmem:[%s277 + $0xd4] sm:$0xf]
        %v335 = vld [vmem:[%s277 + $0xd8] sm:$0xf]
        %v336 = vld [vmem:[%s277 + $0xdc] sm:$0xf]
        %v337 = vld [vmem:[%s277 + $0xe0] sm:$0xf]
        %v338 = vld [vmem:[%s277 + $0xe4] sm:$0xf]
        %v339 = vld [vmem:[%s277 + $0xe8] sm:$0xf]
        %v340 = vld [vmem:[%s277 + $0xec] sm:$0xf]
        %v341 = vld [vmem:[%s277 + $0xf0] sm:$0xf]
        %v342 = vld [vmem:[%s277 + $0xf4] sm:$0xf]
        %v343 = vld [vmem:[%s277 + $0xf8] sm:$0xf]
        %v344 = vld [vmem:[%s277 + $0xfc] sm:$0xf]
        %v345 = vld [vmem:[%s1] sm:$0xf]
        %v346 = vld [vmem:[%s1 + $0x4] sm:$0xf]
        %v347 = vld [vmem:[%s1 + $0x8] sm:$0xf]
        %v348 = vld [vmem:[%s1 + $0xc] sm:$0xf]
        %v349 = vld [vmem:[%s1 + $0x10] sm:$0xf]
        %v350 = vld [vmem:[%s1 + $0x14] sm:$0xf]
        %v351 = vld [vmem:[%s2] sm:$0x1]
        %v353 = vlaneseq
        %v354 = vshrl.u32 %v353, 7
        %v355 = vsub.s32 0, %v354
        %v356 = vrot.slane %v351, %v355
        %v422 = vunpack.c.l.b16 %v281
        %v423 = vunpack.c.l.b16 %v282
        %v424 = vunpack.c.l.b16 %v283
        %v425 = vunpack.c.l.b16 %v284
        %v426 = vunpack.c.l.b16 %v285
        %v427 = vunpack.c.l.b16 %v286
        %v428 = vunpack.c.l.b16 %v287
        %v429 = vunpack.c.l.b16 %v288
        %v430 = vunpack.c.l.b16 %v289
        %v431 = vunpack.c.l.b16 %v290
        %v432 = vunpack.c.l.b16 %v291
        %v433 = vunpack.c.l.b16 %v292
        %v434 = vunpack.c.l.b16 %v293
        %v435 = vunpack.c.l.b16 %v294
        %v436 = vunpack.c.l.b16 %v295
        %v437 = vunpack.c.l.b16 %v296
        %v438 = vunpack.c.l.b16 %v297
        %v439 = vunpack.c.l.b16 %v298
        %v440 = vunpack.c.l.b16 %v299
        %v441 = vunpack.c.l.b16 %v300
        %v442 = vunpack.c.l.b16 %v301
        %v443 = vunpack.c.l.b16 %v302
        %v444 = vunpack.c.l.b16 %v303
        %v445 = vunpack.c.l.b16 %v304
        %v446 = vunpack.c.l.b16 %v305
        %v447 = vunpack.c.l.b16 %v306
        %v448 = vunpack.c.l.b16 %v307
        %v449 = vunpack.c.l.b16 %v308
        %v450 = vunpack.c.l.b16 %v309
        %v451 = vunpack.c.l.b16 %v310
        %v452 = vunpack.c.l.b16 %v311
        %v453 = vunpack.c.l.b16 %v312
        %v454 = vunpack.c.l.b16 %v313
        %v455 = vunpack.c.l.b16 %v314
        %v456 = vunpack.c.l.b16 %v315
        %v457 = vunpack.c.l.b16 %v316
        %v458 = vunpack.c.l.b16 %v317
        %v459 = vunpack.c.l.b16 %v318
        %v460 = vunpack.c.l.b16 %v319
        %v461 = vunpack.c.l.b16 %v320
        %v462 = vunpack.c.l.b16 %v321
        %v463 = vunpack.c.l.b16 %v322
        %v464 = vunpack.c.l.b16 %v323
        %v465 = vunpack.c.l.b16 %v324
        %v466 = vunpack.c.l.b16 %v325
        %v467 = vunpack.c.l.b16 %v326
        %v468 = vunpack.c.l.b16 %v327
        %v469 = vunpack.c.l.b16 %v328
        %v470 = vunpack.c.l.b16 %v329
        %v471 = vunpack.c.l.b16 %v330
        %v472 = vunpack.c.l.b16 %v331
        %v473 = vunpack.c.l.b16 %v332
        %v474 = vunpack.c.l.b16 %v333
        %v475 = vunpack.c.l.b16 %v334
        %v476 = vunpack.c.l.b16 %v335
        %v477 = vunpack.c.l.b16 %v336
        %v478 = vunpack.c.l.b16 %v337
        %v479 = vunpack.c.l.b16 %v338
        %v480 = vunpack.c.l.b16 %v339
        %v481 = vunpack.c.l.b16 %v340
        %v482 = vunpack.c.l.b16 %v341
        %v483 = vunpack.c.l.b16 %v342
        %v484 = vunpack.c.l.b16 %v343
        %v485 = vunpack.c.l.b16 %v344
        %v486 = vpack.c.b16 %v423, %v422
        %v487 = vpack.c.b16 %v425, %v424
        %v488 = vpack.c.b16 %v427, %v426
        %v489 = vpack.c.b16 %v429, %v428
        %v490 = vpack.c.b16 %v431, %v430
        %v491 = vpack.c.b16 %v433, %v432
        %v492 = vpack.c.b16 %v435, %v434
        %v493 = vpack.c.b16 %v437, %v436
        %v494 = vpack.c.b16 %v439, %v438
        %v495 = vpack.c.b16 %v441, %v440
        %v496 = vpack.c.b16 %v443, %v442
        %v497 = vpack.c.b16 %v445, %v444
        %v498 = vpack.c.b16 %v447, %v446
        %v499 = vpack.c.b16 %v449, %v448
        %v500 = vpack.c.b16 %v451, %v450
        %v501 = vpack.c.b16 %v453, %v452
        %v502 = vpack.c.b16 %v455, %v454
        %v503 = vpack.c.b16 %v457, %v456
        %v504 = vpack.c.b16 %v459, %v458
        %v505 = vpack.c.b16 %v461, %v460
        %v506 = vpack.c.b16 %v463, %v462
        %v507 = vpack.c.b16 %v465, %v464
        %v508 = vpack.c.b16 %v467, %v466
        %v509 = vpack.c.b16 %v469, %v468
        %v510 = vpack.c.b16 %v471, %v470
        %v511 = vpack.c.b16 %v473, %v472
        %v512 = vpack.c.b16 %v475, %v474
        %v513 = vpack.c.b16 %v477, %v476
        %v514 = vpack.c.b16 %v479, %v478
        %v515 = vpack.c.b16 %v481, %v480
        %v516 = vpack.c.b16 %v483, %v482
        %v517 = vpack.c.b16 %v485, %v484
        %v524 = vunpack.c.l.b16 %v345
        %v525 = vunpack.c.l.b16 %v346
        %v526 = vunpack.c.l.b16 %v347
        %v527 = vunpack.c.l.b16 %v348
        %v528 = vunpack.c.l.b16 %v349
        %v529 = vunpack.c.l.b16 %v350
        %v530 = vpack.c.b16 %v525, %v524
        %v531 = vpack.c.b16 %v527, %v526
        %v532 = vpack.c.b16 %v529, %v528
        %vm536 = vcmask 392192
        %v538 = vsel %vm536, %v486, 0
        %v541 = vsel %vm536, %v487, 0
        %v544 = vsel %vm536, %v488, 0
        %v547 = vsel %vm536, %v489, 0
        %v550 = vsel %vm536, %v490, 0
        %v553 = vsel %vm536, %v491, 0
        %v556 = vsel %vm536, %v492, 0
        %v559 = vsel %vm536, %v493, 0
        %v562 = vsel %vm536, %v494, 0
        %v565 = vsel %vm536, %v495, 0
        %v568 = vsel %vm536, %v496, 0
        %v571 = vsel %vm536, %v497, 0
        %v574 = vsel %vm536, %v498, 0
        %v577 = vsel %vm536, %v499, 0
        %v580 = vsel %vm536, %v500, 0
        %v583 = vsel %vm536, %v501, 0
        %v586 = vsel %vm536, %v502, 0
        %v589 = vsel %vm536, %v503, 0
        %v592 = vsel %vm536, %v504, 0
        %v595 = vsel %vm536, %v505, 0
        %v598 = vsel %vm536, %v506, 0
        %v601 = vsel %vm536, %v507, 0
        %v604 = vsel %vm536, %v508, 0
        %v607 = vsel %vm536, %v509, 0
        %v610 = vsel %vm536, %v510, 0
        %v613 = vsel %vm536, %v511, 0
        %v616 = vsel %vm536, %v512, 0
        %v619 = vsel %vm536, %v513, 0
        %v622 = vsel %vm536, %v514, 0
        %v625 = vsel %vm536, %v515, 0
        %v628 = vsel %vm536, %v516, 0
        %v631 = vsel %vm536, %v517, 0
        %633 = vmatprep.subr.bf16.mxu0 0
        %634 = vmatpush1.bf16.msra.mxu0 %v530
        %635 = vmatprep.subr.bf16.mxu0 0
        %636 = vmatpush1.bf16.msra.mxu0 %v531
        %637 = vmatprep.subr.bf16.mxu0 0
        %638 = vmatpush1.bf16.msra.mxu0 %v532
        %639 = vmatprep.subr.bf16.mxu0 0
        %640 = vmatpush1.bf16.msra.mxu0 0
        %641 = vmatprep.subr.bf16.mxu0 0
        %642 = vmatpush1.bf16.msra.mxu0 0
        %643 = vmatprep.subr.bf16.mxu0 0
        %644 = vmatpush1.bf16.msra.mxu0 0
        %645 = vmatprep.subr.bf16.mxu0 0
        %646 = vmatpush1.bf16.msra.mxu0 0
        %647 = vmatprep.subr.bf16.mxu0 0
        %648 = vmatpush1.bf16.msra.mxu0 0
        %649 = vmatprep.subr.bf16.mxu0 0
        %650 = vmatpush1.bf16.msra.mxu0 0
        %651 = vmatprep.subr.bf16.mxu0 0
        %652 = vmatpush1.bf16.msra.mxu0 0
        %653 = vmatprep.subr.bf16.mxu0 0
        %654 = vmatpush1.bf16.msra.mxu0 0
        %655 = vmatprep.subr.bf16.mxu0 0
        %656 = vmatpush1.bf16.msra.mxu0 0
        %657 = vmatprep.subr.bf16.mxu0 0
        %658 = vmatpush1.bf16.msra.mxu0 0
        %659 = vmatprep.subr.bf16.mxu0 0
        %660 = vmatpush1.bf16.msra.mxu0 0
        %661 = vmatprep.subr.bf16.mxu0 0
        %662 = vmatpush1.bf16.msra.mxu0 0
        %663 = vmatprep.subr.bf16.mxu0 0
        %664 = vmatpush1.bf16.msra.mxu0 0
        %665 = vmatprep.mubr.bf16.mxu0 0
        %666 = vmatmul.mubr.bf16.gmra.mrb[0].mxu0 %v538
        %v667 = vpop.f32.mrb[0].mxu0
        %v668 = vadd.f32 %v356, %v667
        %v669 = vpop.f32.mrb[0].mxu0
        %v670 = vpop.f32.mrb[0].mxu0
        %v671 = vadd.f32 %v356, %v670
        %v672 = vpop.f32.mrb[0].mxu0
        %673 = vmatprep.mubr.bf16.mxu0 0
        %674 = vmatmul.mubr.bf16.gmra.mrb[0].mxu0 %v541
        %v675 = vpop.f32.mrb[0].mxu0
        %v676 = vadd.f32 %v356, %v675
        %v677 = vpop.f32.mrb[0].mxu0
        %v678 = vpop.f32.mrb[0].mxu0
        %v679 = vadd.f32 %v356, %v678
        %v680 = vpop.f32.mrb[0].mxu0
        %681 = vmatprep.mubr.bf16.mxu0 0
        %682 = vmatmul.mubr.bf16.gmra.mrb[0].mxu0 %v544
        %v683 = vpop.f32.mrb[0].mxu0
        %v684 = vadd.f32 %v356, %v683
        %v685 = vpop.f32.mrb[0].mxu0
        %v686 = vpop.f32.mrb[0].mxu0
        %v687 = vadd.f32 %v356, %v686
        %v688 = vpop.f32.mrb[0].mxu0
        %689 = vmatprep.mubr.bf16.mxu0 0
        %690 = vmatmul.mubr.bf16.gmra.mrb[0].mxu0 %v547
        %v691 = vpop.f32.mrb[0].mxu0
        %v692 = vadd.f32 %v356, %v691
        %v693 = vpop.f32.mrb[0].mxu0
        %v694 = vpop.f32.mrb[0].mxu0
        %v695 = vadd.f32 %v356, %v694
        %v696 = vpop.f32.mrb[0].mxu0
        %697 = vmatprep.mubr.bf16.mxu0 0
        %698 = vmatmul.mubr.bf16.gmra.mrb[0].mxu0 %v550
        %v699 = vpop.f32.mrb[0].mxu0
        %v700 = vadd.f32 %v356, %v699
        %v701 = vpop.f32.mrb[0].mxu0
        %v702 = vpop.f32.mrb[0].mxu0
        %v703 = vadd.f32 %v356, %v702
        %v704 = vpop.f32.mrb[0].mxu0
        %705 = vmatprep.mubr.bf16.mxu0 0
        %706 = vmatmul.mubr.bf16.gmra.mrb[0].mxu0 %v553
        %v707 = vpop.f32.mrb[0].mxu0
        %v708 = vadd.f32 %v356, %v707
        %v709 = vpop.f32.mrb[0].mxu0
        %v710 = vpop.f32.mrb[0].mxu0
        %v711 = vadd.f32 %v356, %v710
        %v712 = vpop.f32.mrb[0].mxu0
        %713 = vmatprep.mubr.bf16.mxu0 0
        %714 = vmatmul.mubr.bf16.gmra.mrb[0].mxu0 %v556
        %v715 = vpop.f32.mrb[0].mxu0
        %v716 = vadd.f32 %v356, %v715
        %v717 = vpop.f32.mrb[0].mxu0
        %v718 = vpop.f32.mrb[0].mxu0
        %v719 = vadd.f32 %v356, %v718
        %v720 = vpop.f32.mrb[0].mxu0
        %721 = vmatprep.mubr.bf16.mxu0 0
        %722 = vmatmul.mubr.bf16.gmra.mrb[0].mxu0 %v559
        %v723 = vpop.f32.mrb[0].mxu0
        %v724 = vadd.f32 %v356, %v723
        %v725 = vpop.f32.mrb[0].mxu0
        %v726 = vpop.f32.mrb[0].mxu0
        %v727 = vadd.f32 %v356, %v726
        %v728 = vpop.f32.mrb[0].mxu0
        %729 = vmatprep.mubr.bf16.mxu0 0
        %730 = vmatmul.mubr.bf16.gmra.mrb[0].mxu0 %v562
        %v731 = vpop.f32.mrb[0].mxu0
        %v732 = vadd.f32 %v356, %v731
        %v733 = vpop.f32.mrb[0].mxu0
        %v734 = vpop.f32.mrb[0].mxu0
        %v735 = vadd.f32 %v356, %v734
        %v736 = vpop.f32.mrb[0].mxu0
        %737 = vmatprep.mubr.bf16.mxu0 0
        %738 = vmatmul.mubr.bf16.gmra.mrb[0].mxu0 %v565
        %v739 = vpop.f32.mrb[0].mxu0
        %v740 = vadd.f32 %v356, %v739
        %v741 = vpop.f32.mrb[0].mxu0
        %v742 = vpop.f32.mrb[0].mxu0
        %v743 = vadd.f32 %v356, %v742
        %v744 = vpop.f32.mrb[0].mxu0
        %745 = vmatprep.mubr.bf16.mxu0 0
        %746 = vmatmul.mubr.bf16.gmra.mrb[0].mxu0 %v568
        %v747 = vpop.f32.mrb[0].mxu0
        %v748 = vadd.f32 %v356, %v747
        %v749 = vpop.f32.mrb[0].mxu0
        %v750 = vpop.f32.mrb[0].mxu0
        %v751 = vadd.f32 %v356, %v750
        %v752 = vpop.f32.mrb[0].mxu0
        %753 = vmatprep.mubr.bf16.mxu0 0
        %754 = vmatmul.mubr.bf16.gmra.mrb[0].mxu0 %v571
        %v755 = vpop.f32.mrb[0].mxu0
        %v756 = vadd.f32 %v356, %v755
        %v757 = vpop.f32.mrb[0].mxu0
        %v758 = vpop.f32.mrb[0].mxu0
        %v759 = vadd.f32 %v356, %v758
        %v760 = vpop.f32.mrb[0].mxu0
        %761 = vmatprep.mubr.bf16.mxu0 0
        %762 = vmatmul.mubr.bf16.gmra.mrb[0].mxu0 %v574
        %v763 = vpop.f32.mrb[0].mxu0
        %v764 = vadd.f32 %v356, %v763
        %v765 = vpop.f32.mrb[0].mxu0
        %v766 = vpop.f32.mrb[0].mxu0
        %v767 = vadd.f32 %v356, %v766
        %v768 = vpop.f32.mrb[0].mxu0
        %769 = vmatprep.mubr.bf16.mxu0 0
        %770 = vmatmul.mubr.bf16.gmra.mrb[0].mxu0 %v577
        %v771 = vpop.f32.mrb[0].mxu0
        %v772 = vadd.f32 %v356, %v771
        %v773 = vpop.f32.mrb[0].mxu0
        %v774 = vpop.f32.mrb[0].mxu0
        %v775 = vadd.f32 %v356, %v774
        %v776 = vpop.f32.mrb[0].mxu0
        %777 = vmatprep.mubr.bf16.mxu0 0
        %778 = vmatmul.mubr.bf16.gmra.mrb[0].mxu0 %v580
        %v779 = vpop.f32.mrb[0].mxu0
        %v780 = vadd.f32 %v356, %v779
        %v781 = vpop.f32.mrb[0].mxu0
        %v782 = vpop.f32.mrb[0].mxu0
        %v783 = vadd.f32 %v356, %v782
        %v784 = vpop.f32.mrb[0].mxu0
        %785 = vmatprep.mubr.bf16.mxu0 0
        %786 = vmatmul.mubr.bf16.gmra.mrb[0].mxu0 %v583
        %v787 = vpop.f32.mrb[0].mxu0
        %v788 = vadd.f32 %v356, %v787
        %v789 = vpop.f32.mrb[0].mxu0
        %v790 = vpop.f32.mrb[0].mxu0
        %v791 = vadd.f32 %v356, %v790
        %v792 = vpop.f32.mrb[0].mxu0
        %793 = vmatprep.mubr.bf16.mxu0 0
        %794 = vmatmul.mubr.bf16.gmra.mrb[0].mxu0 %v586
        %v795 = vpop.f32.mrb[0].mxu0
        %v796 = vadd.f32 %v356, %v795
        %v797 = vpop.f32.mrb[0].mxu0
        %v798 = vpop.f32.mrb[0].mxu0
        %v799 = vadd.f32 %v356, %v798
        %v800 = vpop.f32.mrb[0].mxu0
        %801 = vmatprep.mubr.bf16.mxu0 0
        %802 = vmatmul.mubr.bf16.gmra.mrb[0].mxu0 %v589
        %v803 = vpop.f32.mrb[0].mxu0
        %v804 = vadd.f32 %v356, %v803
        %v805 = vpop.f32.mrb[0].mxu0
        %v806 = vpop.f32.mrb[0].mxu0
        %v807 = vadd.f32 %v356, %v806
        %v808 = vpop.f32.mrb[0].mxu0
        %809 = vmatprep.mubr.bf16.mxu0 0
        %810 = vmatmul.mubr.bf16.gmra.mrb[0].mxu0 %v592
        %v811 = vpop.f32.mrb[0].mxu0
        %v812 = vadd.f32 %v356, %v811
        %v813 = vpop.f32.mrb[0].mxu0
        %v814 = vpop.f32.mrb[0].mxu0
        %v815 = vadd.f32 %v356, %v814
        %v816 = vpop.f32.mrb[0].mxu0
        %817 = vmatprep.mubr.bf16.mxu0 0
        %818 = vmatmul.mubr.bf16.gmra.mrb[0].mxu0 %v595
        %v819 = vpop.f32.mrb[0].mxu0
        %v820 = vadd.f32 %v356, %v819
        %v821 = vpop.f32.mrb[0].mxu0
        %v822 = vpop.f32.mrb[0].mxu0
        %v823 = vadd.f32 %v356, %v822
        %v824 = vpop.f32.mrb[0].mxu0
        %825 = vmatprep.mubr.bf16.mxu0 0
        %826 = vmatmul.mubr.bf16.gmra.mrb[0].mxu0 %v598
        %v827 = vpop.f32.mrb[0].mxu0
        %v828 = vadd.f32 %v356, %v827
        %v829 = vpop.f32.mrb[0].mxu0
        %v830 = vpop.f32.mrb[0].mxu0
        %v831 = vadd.f32 %v356, %v830
        %v832 = vpop.f32.mrb[0].mxu0
        %833 = vmatprep.mubr.bf16.mxu0 0
        %834 = vmatmul.mubr.bf16.gmra.mrb[0].mxu0 %v601
        %v835 = vpop.f32.mrb[0].mxu0
        %v836 = vadd.f32 %v356, %v835
        %v837 = vpop.f32.mrb[0].mxu0
        %v838 = vpop.f32.mrb[0].mxu0
        %v839 = vadd.f32 %v356, %v838
        %v840 = vpop.f32.mrb[0].mxu0
        %841 = vmatprep.mubr.bf16.mxu0 0
        %842 = vmatmul.mubr.bf16.gmra.mrb[0].mxu0 %v604
        %v843 = vpop.f32.mrb[0].mxu0
        %v844 = vadd.f32 %v356, %v843
        %v845 = vpop.f32.mrb[0].mxu0
        %v846 = vpop.f32.mrb[0].mxu0
        %v847 = vadd.f32 %v356, %v846
        %v848 = vpop.f32.mrb[0].mxu0
        %849 = vmatprep.mubr.bf16.mxu0 0
        %850 = vmatmul.mubr.bf16.gmra.mrb[0].mxu0 %v607
        %v851 = vpop.f32.mrb[0].mxu0
        %v852 = vadd.f32 %v356, %v851
        %v853 = vpop.f32.mrb[0].mxu0
        %v854 = vpop.f32.mrb[0].mxu0
        %v855 = vadd.f32 %v356, %v854
        %v856 = vpop.f32.mrb[0].mxu0
        %857 = vmatprep.mubr.bf16.mxu0 0
        %858 = vmatmul.mubr.bf16.gmra.mrb[0].mxu0 %v610
        %v859 = vpop.f32.mrb[0].mxu0
        %v860 = vadd.f32 %v356, %v859
        %v861 = vpop.f32.mrb[0].mxu0
        %v862 = vpop.f32.mrb[0].mxu0
        %v863 = vadd.f32 %v356, %v862
        %v864 = vpop.f32.mrb[0].mxu0
        %865 = vmatprep.mubr.bf16.mxu0 0
        %866 = vmatmul.mubr.bf16.gmra.mrb[0].mxu0 %v613
        %v867 = vpop.f32.mrb[0].mxu0
        %v868 = vadd.f32 %v356, %v867
        %v869 = vpop.f32.mrb[0].mxu0
        %v870 = vpop.f32.mrb[0].mxu0
        %v871 = vadd.f32 %v356, %v870
        %v872 = vpop.f32.mrb[0].mxu0
        %873 = vmatprep.mubr.bf16.mxu0 0
        %874 = vmatmul.mubr.bf16.gmra.mrb[0].mxu0 %v616
        %v875 = vpop.f32.mrb[0].mxu0
        %v876 = vadd.f32 %v356, %v875
        %v877 = vpop.f32.mrb[0].mxu0
        %v878 = vpop.f32.mrb[0].mxu0
        %v879 = vadd.f32 %v356, %v878
        %v880 = vpop.f32.mrb[0].mxu0
        %881 = vmatprep.mubr.bf16.mxu0 0
        %882 = vmatmul.mubr.bf16.gmra.mrb[0].mxu0 %v619
        %v883 = vpop.f32.mrb[0].mxu0
        %v884 = vadd.f32 %v356, %v883
        %v885 = vpop.f32.mrb[0].mxu0
        %v886 = vpop.f32.mrb[0].mxu0
        %v887 = vadd.f32 %v356, %v886
        %v888 = vpop.f32.mrb[0].mxu0
        %889 = vmatprep.mubr.bf16.mxu0 0
        %890 = vmatmul.mubr.bf16.gmra.mrb[0].mxu0 %v622
        %v891 = vpop.f32.mrb[0].mxu0
        %v892 = vadd.f32 %v356, %v891
        %v893 = vpop.f32.mrb[0].mxu0
        %v894 = vpop.f32.mrb[0].mxu0
        %v895 = vadd.f32 %v356, %v894
        %v896 = vpop.f32.mrb[0].mxu0
        %897 = vmatprep.mubr.bf16.mxu0 0
        %898 = vmatmul.mubr.bf16.gmra.mrb[0].mxu0 %v625
        %v899 = vpop.f32.mrb[0].mxu0
        %v900 = vadd.f32 %v356, %v899
        %v901 = vpop.f32.mrb[0].mxu0
        %v902 = vpop.f32.mrb[0].mxu0
        %v903 = vadd.f32 %v356, %v902
        %v904 = vpop.f32.mrb[0].mxu0
        %905 = vmatprep.mubr.bf16.mxu0 0
        %906 = vmatmul.mubr.bf16.gmra.mrb[0].mxu0 %v628
        %v907 = vpop.f32.mrb[0].mxu0
        %v908 = vadd.f32 %v356, %v907
        %v909 = vpop.f32.mrb[0].mxu0
        %v910 = vpop.f32.mrb[0].mxu0
        %v911 = vadd.f32 %v356, %v910
        %v912 = vpop.f32.mrb[0].mxu0
        %913 = vmatprep.mubr.bf16.mxu0 0
        %914 = vmatmul.mubr.bf16.gmra.mrb[0].mxu0 %v631
        %v915 = vpop.f32.mrb[0].mxu0
        %v916 = vadd.f32 %v356, %v915
        %v917 = vpop.f32.mrb[0].mxu0
        %v918 = vpop.f32.mrb[0].mxu0
        %v919 = vadd.f32 %v356, %v918
        %v920 = vpop.f32.mrb[0].mxu0
        %921 = vdwg.mxu0
        %v922 = vld [vmem:[%s3] sm:$0x1]
        %vm923 = vcmp.gt.f32.partialorder %v922, 0.5
        %v924 = vmax.f32 %v668, 0.0
        %v925 = vmax.f32 %v671, 0.0
        %v926 = vmax.f32 %v676, 0.0
        %v927 = vmax.f32 %v679, 0.0
        %v928 = vmax.f32 %v684, 0.0
        %v929 = vmax.f32 %v687, 0.0
        %v930 = vmax.f32 %v692, 0.0
        %v931 = vmax.f32 %v695, 0.0
        %v932 = vmax.f32 %v700, 0.0
        %v933 = vmax.f32 %v703, 0.0
        %v934 = vmax.f32 %v708, 0.0
        %v935 = vmax.f32 %v711, 0.0
        %v936 = vmax.f32 %v716, 0.0
        %v937 = vmax.f32 %v719, 0.0
        %v938 = vmax.f32 %v724, 0.0
        %v939 = vmax.f32 %v727, 0.0
        %v940 = vmax.f32 %v732, 0.0
        %v941 = vmax.f32 %v735, 0.0
        %v942 = vmax.f32 %v740, 0.0
        %v943 = vmax.f32 %v743, 0.0
        %v944 = vmax.f32 %v748, 0.0
        %v945 = vmax.f32 %v751, 0.0
        %v946 = vmax.f32 %v756, 0.0
        %v947 = vmax.f32 %v759, 0.0
        %v948 = vmax.f32 %v764, 0.0
        %v949 = vmax.f32 %v767, 0.0
        %v950 = vmax.f32 %v772, 0.0
        %v951 = vmax.f32 %v775, 0.0
        %v952 = vmax.f32 %v780, 0.0
        %v953 = vmax.f32 %v783, 0.0
        %v954 = vmax.f32 %v788, 0.0
        %v955 = vmax.f32 %v791, 0.0
        %v956 = vmax.f32 %v796, 0.0
        %v957 = vmax.f32 %v799, 0.0
        %v958 = vmax.f32 %v804, 0.0
        %v959 = vmax.f32 %v807, 0.0
        %v960 = vmax.f32 %v812, 0.0
        %v961 = vmax.f32 %v815, 0.0
        %v962 = vmax.f32 %v820, 0.0
        %v963 = vmax.f32 %v823, 0.0
        %v964 = vmax.f32 %v828, 0.0
        %v965 = vmax.f32 %v831, 0.0
        %v966 = vmax.f32 %v836, 0.0
        %v967 = vmax.f32 %v839, 0.0
        %v968 = vmax.f32 %v844, 0.0
        %v969 = vmax.f32 %v847, 0.0
        %v970 = vmax.f32 %v852, 0.0
        %v971 = vmax.f32 %v855, 0.0
        %v972 = vmax.f32 %v860, 0.0
        %v973 = vmax.f32 %v863, 0.0
        %v974 = vmax.f32 %v868, 0.0
        %v975 = vmax.f32 %v871, 0.0
        %v976 = vmax.f32 %v876, 0.0
        %v977 = vmax.f32 %v879, 0.0
        %v978 = vmax.f32 %v884, 0.0
        %v979 = vmax.f32 %v887, 0.0
        %v980 = vmax.f32 %v892, 0.0
        %v981 = vmax.f32 %v895, 0.0
        %v982 = vmax.f32 %v900, 0.0
        %v983 = vmax.f32 %v903, 0.0
        %v984 = vmax.f32 %v908, 0.0
        %v985 = vmax.f32 %v911, 0.0
        %v986 = vmax.f32 %v916, 0.0
        %v987 = vmax.f32 %v919, 0.0
        %v988 = vsel %vm923, 1, 0
        %v989 = vlaneseq
        %v990 = vshrl.u32 %v989, 7
        %v991 = vsub.s32 0, %v990
        %v992 = vrot.slane %v988, %v991
        %vm993 = vcmp.eq.s32.totalorder %v992, 1
        %v994 = vsel %vm993, %v924, %v668
        %v995 = vsel %vm993, %v925, %v671
        %v996 = vsel %vm993, %v926, %v676
        %v997 = vsel %vm993, %v927, %v679
        %v998 = vsel %vm993, %v928, %v684
        %v999 = vsel %vm993, %v929, %v687
        %v1000 = vsel %vm993, %v930, %v692
        %v1001 = vsel %vm993, %v931, %v695
        %v1002 = vsel %vm993, %v932, %v700
        %v1003 = vsel %vm993, %v933, %v703
        %v1004 = vsel %vm993, %v934, %v708
        %v1005 = vsel %vm993, %v935, %v711
        %v1006 = vsel %vm993, %v936, %v716
        %v1007 = vsel %vm993, %v937, %v719
        %v1008 = vsel %vm993, %v938, %v724
        %v1009 = vsel %vm993, %v939, %v727
        %v1010 = vsel %vm993, %v940, %v732
        %v1011 = vsel %vm993, %v941, %v735
        %v1012 = vsel %vm993, %v942, %v740
        %v1013 = vsel %vm993, %v943, %v743
        %v1014 = vsel %vm993, %v944, %v748
        %v1015 = vsel %vm993, %v945, %v751
        %v1016 = vsel %vm993, %v946, %v756
        %v1017 = vsel %vm993, %v947, %v759
        %v1018 = vsel %vm993, %v948, %v764
        %v1019 = vsel %vm993, %v949, %v767
        %v1020 = vsel %vm993, %v950, %v772
        %v1021 = vsel %vm993, %v951, %v775
        %v1022 = vsel %vm993, %v952, %v780
        %v1023 = vsel %vm993, %v953, %v783
        %v1024 = vsel %vm993, %v954, %v788
        %v1025 = vsel %vm993, %v955, %v791
        %v1026 = vsel %vm993, %v956, %v796
        %v1027 = vsel %vm993, %v957, %v799
        %v1028 = vsel %vm993, %v958, %v804
        %v1029 = vsel %vm993, %v959, %v807
        %v1030 = vsel %vm993, %v960, %v812
        %v1031 = vsel %vm993, %v961, %v815
        %v1032 = vsel %vm993, %v962, %v820
        %v1033 = vsel %vm993, %v963, %v823
        %v1034 = vsel %vm993, %v964, %v828
        %v1035 = vsel %vm993, %v965, %v831
        %v1036 = vsel %vm993, %v966, %v836
        %v1037 = vsel %vm993, %v967, %v839
        %v1038 = vsel %vm993, %v968, %v844
        %v1039 = vsel %vm993, %v969, %v847
        %v1040 = vsel %vm993, %v970, %v852
        %v1041 = vsel %vm993, %v971, %v855
        %v1042 = vsel %vm993, %v972, %v860
        %v1043 = vsel %vm993, %v973, %v863
        %v1044 = vsel %vm993, %v974, %v868
        %v1045 = vsel %vm993, %v975, %v871
        %v1046 = vsel %vm993, %v976, %v876
        %v1047 = vsel %vm993, %v977, %v879
        %v1048 = vsel %vm993, %v978, %v884
        %v1049 = vsel %vm993, %v979, %v887
        %v1050 = vsel %vm993, %v980, %v892
        %v1051 = vsel %vm993, %v981, %v895
        %v1052 = vsel %vm993, %v982, %v900
        %v1053 = vsel %vm993, %v983, %v903
        %v1054 = vsel %vm993, %v984, %v908
        %v1055 = vsel %vm993, %v985, %v911
        %v1056 = vsel %vm993, %v986, %v916
        %v1057 = vsel %vm993, %v987, %v919
        %v1058 = vpack.c.bf16 %v995, %v994
        %v1059 = vpack.c.bf16 %v997, %v996
        %v1060 = vpack.c.bf16 %v999, %v998
        %v1061 = vpack.c.bf16 %v1001, %v1000
        %v1062 = vpack.c.bf16 %v1003, %v1002
        %v1063 = vpack.c.bf16 %v1005, %v1004
        %v1064 = vpack.c.bf16 %v1007, %v1006
        %v1065 = vpack.c.bf16 %v1009, %v1008
        %v1066 = vpack.c.bf16 %v1011, %v1010
        %v1067 = vpack.c.bf16 %v1013, %v1012
        %v1068 = vpack.c.bf16 %v1015, %v1014
        %v1069 = vpack.c.bf16 %v1017, %v1016
        %v1070 = vpack.c.bf16 %v1019, %v1018
        %v1071 = vpack.c.bf16 %v1021, %v1020
        %v1072 = vpack.c.bf16 %v1023, %v1022
        %v1073 = vpack.c.bf16 %v1025, %v1024
        %v1074 = vpack.c.bf16 %v1027, %v1026
        %v1075 = vpack.c.bf16 %v1029, %v1028
        %v1076 = vpack.c.bf16 %v1031, %v1030
        %v1077 = vpack.c.bf16 %v1033, %v1032
        %v1078 = vpack.c.bf16 %v1035, %v1034
        %v1079 = vpack.c.bf16 %v1037, %v1036
        %v1080 = vpack.c.bf16 %v1039, %v1038
        %v1081 = vpack.c.bf16 %v1041, %v1040
        %v1082 = vpack.c.bf16 %v1043, %v1042
        %v1083 = vpack.c.bf16 %v1045, %v1044
        %v1084 = vpack.c.bf16 %v1047, %v1046
        %v1085 = vpack.c.bf16 %v1049, %v1048
        %v1086 = vpack.c.bf16 %v1051, %v1050
        %v1087 = vpack.c.bf16 %v1053, %v1052
        %v1088 = vpack.c.bf16 %v1055, %v1054
        %v1089 = vpack.c.bf16 %v1057, %v1056
        %v1090 = vld [vmem:[%s4] sm:$0xf]
        %v1091 = vld [vmem:[%s4 + $0x4] sm:$0xf]
        %v1092 = vld [vmem:[%s4 + $0x8] sm:$0xf]
        %v1093 = vld [vmem:[%s4 + $0xc] sm:$0xf]
        %v1094 = vld [vmem:[%s4 + $0x10] sm:$0xf]
        %v1095 = vld [vmem:[%s4 + $0x14] sm:$0xf]
        %v1096 = vld [vmem:[%s4 + $0x18] sm:$0xf]
        %v1097 = vld [vmem:[%s4 + $0x1c] sm:$0xf]
        %v1098 = vld [vmem:[%s4 + $0x20] sm:$0xf]
        %v1099 = vld [vmem:[%s4 + $0x24] sm:$0xf]
        %v1100 = vld [vmem:[%s4 + $0x28] sm:$0xf]
        %v1101 = vld [vmem:[%s4 + $0x2c] sm:$0xf]
        %v1102 = vld [vmem:[%s4 + $0x30] sm:$0xf]
        %v1103 = vld [vmem:[%s4 + $0x34] sm:$0xf]
        %v1104 = vld [vmem:[%s4 + $0x38] sm:$0xf]
        %v1105 = vld [vmem:[%s4 + $0x3c] sm:$0xf]
        %v1106 = vld [vmem:[%s5] sm:$0x1]
        %v1108 = vlaneseq
        %v1109 = vshrl.u32 %v1108, 7
        %v1110 = vsub.s32 0, %v1109
        %v1111 = vrot.slane %v1106, %v1110
        %v1129 = vunpack.c.l.b16 %v1090
        %v1130 = vunpack.c.l.b16 %v1091
        %v1131 = vunpack.c.l.b16 %v1092
        %v1132 = vunpack.c.l.b16 %v1093
        %v1133 = vunpack.c.l.b16 %v1094
        %v1134 = vunpack.c.l.b16 %v1095
        %v1135 = vunpack.c.l.b16 %v1096
        %v1136 = vunpack.c.l.b16 %v1097
        %v1137 = vunpack.c.l.b16 %v1098
        %v1138 = vunpack.c.l.b16 %v1099
        %v1139 = vunpack.c.l.b16 %v1100
        %v1140 = vunpack.c.l.b16 %v1101
        %v1141 = vunpack.c.l.b16 %v1102
        %v1142 = vunpack.c.l.b16 %v1103
        %v1143 = vunpack.c.l.b16 %v1104
        %v1144 = vunpack.c.l.b16 %v1105
        %v1145 = vpack.c.b16 %v1130, %v1129
        %v1146 = vpack.c.b16 %v1132, %v1131
        %v1147 = vpack.c.b16 %v1134, %v1133
        %v1148 = vpack.c.b16 %v1136, %v1135
        %v1149 = vpack.c.b16 %v1138, %v1137
        %v1150 = vpack.c.b16 %v1140, %v1139
        %v1151 = vpack.c.b16 %v1142, %v1141
        %v1152 = vpack.c.b16 %v1144, %v1143
        %1161 = vmatprep.subr.bf16.mxu0 0
        %1162 = vmatpush1.bf16.msra.mxu0 %v1145
        %1163 = vmatprep.subr.bf16.mxu0 0
        %1164 = vmatpush1.bf16.msra.mxu0 %v1146
        %1165 = vmatprep.subr.bf16.mxu0 0
        %1166 = vmatpush1.bf16.msra.mxu0 %v1147
        %1167 = vmatprep.subr.bf16.mxu0 0
        %1168 = vmatpush1.bf16.msra.mxu0 %v1148
        %1169 = vmatprep.subr.bf16.mxu0 0
        %1170 = vmatpush1.bf16.msra.mxu0 %v1149
        %1171 = vmatprep.subr.bf16.mxu0 0
        %1172 = vmatpush1.bf16.msra.mxu0 %v1150
        %1173 = vmatprep.subr.bf16.mxu0 0
        %1174 = vmatpush1.bf16.msra.mxu0 %v1151
        %1175 = vmatprep.subr.bf16.mxu0 0
        %1176 = vmatpush1.bf16.msra.mxu0 %v1152
        %1177 = vmatprep.subr.bf16.mxu0 0
        %1178 = vmatpush1.bf16.msra.mxu0 0
        %1179 = vmatprep.subr.bf16.mxu0 0
        %1180 = vmatpush1.bf16.msra.mxu0 0
        %1181 = vmatprep.subr.bf16.mxu0 0
        %1182 = vmatpush1.bf16.msra.mxu0 0
        %1183 = vmatprep.subr.bf16.mxu0 0
        %1184 = vmatpush1.bf16.msra.mxu0 0
        %1185 = vmatprep.subr.bf16.mxu0 0
        %1186 = vmatpush1.bf16.msra.mxu0 0
        %1187 = vmatprep.subr.bf16.mxu0 0
        %1188 = vmatpush1.bf16.msra.mxu0 0
        %1189 = vmatprep.subr.bf16.mxu0 0
        %1190 = vmatpush1.bf16.msra.mxu0 0
        %1191 = vmatprep.subr.bf16.mxu0 0
        %1192 = vmatpush1.bf16.msra.mxu0 0
        %1193 = vmatprep.mubr.bf16.mxu0 0
        %1194 = vmatmul.mubr.bf16.gmra.mrb[0].mxu0 %v1058
        %v1195 = vpop.f32.mrb[0].mxu0
        %v1196 = vadd.f32 %v1111, %v1195
        %v1197 = vpop.f32.mrb[0].mxu0
        %v1198 = vpop.f32.mrb[0].mxu0
        %v1199 = vadd.f32 %v1111, %v1198
        %v1200 = vpop.f32.mrb[0].mxu0
        %1201 = vmatprep.mubr.bf16.mxu0 0
        %1202 = vmatmul.mubr.bf16.gmra.mrb[0].mxu0 %v1059
        %v1203 = vpop.f32.mrb[0].mxu0
        %v1204 = vadd.f32 %v1111, %v1203
        %v1205 = vpop.f32.mrb[0].mxu0
        %v1206 = vpop.f32.mrb[0].mxu0
        %v1207 = vadd.f32 %v1111, %v1206
        %v1208 = vpop.f32.mrb[0].mxu0
        %1209 = vmatprep.mubr.bf16.mxu0 0
        %1210 = vmatmul.mubr.bf16.gmra.mrb[0].mxu0 %v1060
        %v1211 = vpop.f32.mrb[0].mxu0
        %v1212 = vadd.f32 %v1111, %v1211
        %v1213 = vpop.f32.mrb[0].mxu0
        %v1214 = vpop.f32.mrb[0].mxu0
        %v1215 = vadd.f32 %v1111, %v1214
        %v1216 = vpop.f32.mrb[0].mxu0
        %1217 = vmatprep.mubr.bf16.mxu0 0
        %1218 = vmatmul.mubr.bf16.gmra.mrb[0].mxu0 %v1061
        %v1219 = vpop.f32.mrb[0].mxu0
        %v1220 = vadd.f32 %v1111, %v1219
        %v1221 = vpop.f32.mrb[0].mxu0
        %v1222 = vpop.f32.mrb[0].mxu0
        %v1223 = vadd.f32 %v1111, %v1222
        %v1224 = vpop.f32.mrb[0].mxu0
        %1225 = vmatprep.mubr.bf16.mxu0 0
        %1226 = vmatmul.mubr.bf16.gmra.mrb[0].mxu0 %v1062
        %v1227 = vpop.f32.mrb[0].mxu0
        %v1228 = vadd.f32 %v1111, %v1227
        %v1229 = vpop.f32.mrb[0].mxu0
        %v1230 = vpop.f32.mrb[0].mxu0
        %v1231 = vadd.f32 %v1111, %v1230
        %v1232 = vpop.f32.mrb[0].mxu0
        %1233 = vmatprep.mubr.bf16.mxu0 0
        %1234 = vmatmul.mubr.bf16.gmra.mrb[0].mxu0 %v1063
        %v1235 = vpop.f32.mrb[0].mxu0
        %v1236 = vadd.f32 %v1111, %v1235
        %v1237 = vpop.f32.mrb[0].mxu0
        %v1238 = vpop.f32.mrb[0].mxu0
        %v1239 = vadd.f32 %v1111, %v1238
        %v1240 = vpop.f32.mrb[0].mxu0
        %1241 = vmatprep.mubr.bf16.mxu0 0
        %1242 = vmatmul.mubr.bf16.gmra.mrb[0].mxu0 %v1064
        %v1243 = vpop.f32.mrb[0].mxu0
        %v1244 = vadd.f32 %v1111, %v1243
        %v1245 = vpop.f32.mrb[0].mxu0
        %v1246 = vpop.f32.mrb[0].mxu0
        %v1247 = vadd.f32 %v1111, %v1246
        %v1248 = vpop.f32.mrb[0].mxu0
        %1249 = vmatprep.mubr.bf16.mxu0 0
        %1250 = vmatmul.mubr.bf16.gmra.mrb[0].mxu0 %v1065
        %v1251 = vpop.f32.mrb[0].mxu0
        %v1252 = vadd.f32 %v1111, %v1251
        %v1253 = vpop.f32.mrb[0].mxu0
        %v1254 = vpop.f32.mrb[0].mxu0
        %v1255 = vadd.f32 %v1111, %v1254
        %v1256 = vpop.f32.mrb[0].mxu0
        %1257 = vmatprep.mubr.bf16.mxu0 0
        %1258 = vmatmul.mubr.bf16.gmra.mrb[0].mxu0 %v1066
        %v1259 = vpop.f32.mrb[0].mxu0
        %v1260 = vadd.f32 %v1111, %v1259
        %v1261 = vpop.f32.mrb[0].mxu0
        %v1262 = vpop.f32.mrb[0].mxu0
        %v1263 = vadd.f32 %v1111, %v1262
        %v1264 = vpop.f32.mrb[0].mxu0
        %1265 = vmatprep.mubr.bf16.mxu0 0
        %1266 = vmatmul.mubr.bf16.gmra.mrb[0].mxu0 %v1067
        %v1267 = vpop.f32.mrb[0].mxu0
        %v1268 = vadd.f32 %v1111, %v1267
        %v1269 = vpop.f32.mrb[0].mxu0
        %v1270 = vpop.f32.mrb[0].mxu0
        %v1271 = vadd.f32 %v1111, %v1270
        %v1272 = vpop.f32.mrb[0].mxu0
        %1273 = vmatprep.mubr.bf16.mxu0 0
        %1274 = vmatmul.mubr.bf16.gmra.mrb[0].mxu0 %v1068
        %v1275 = vpop.f32.mrb[0].mxu0
        %v1276 = vadd.f32 %v1111, %v1275
        %v1277 = vpop.f32.mrb[0].mxu0
        %v1278 = vpop.f32.mrb[0].mxu0
        %v1279 = vadd.f32 %v1111, %v1278
        %v1280 = vpop.f32.mrb[0].mxu0
        %1281 = vmatprep.mubr.bf16.mxu0 0
        %1282 = vmatmul.mubr.bf16.gmra.mrb[0].mxu0 %v1069
        %v1283 = vpop.f32.mrb[0].mxu0
        %v1284 = vadd.f32 %v1111, %v1283
        %v1285 = vpop.f32.mrb[0].mxu0
        %v1286 = vpop.f32.mrb[0].mxu0
        %v1287 = vadd.f32 %v1111, %v1286
        %v1288 = vpop.f32.mrb[0].mxu0
        %1289 = vmatprep.mubr.bf16.mxu0 0
        %1290 = vmatmul.mubr.bf16.gmra.mrb[0].mxu0 %v1070
        %v1291 = vpop.f32.mrb[0].mxu0
        %v1292 = vadd.f32 %v1111, %v1291
        %v1293 = vpop.f32.mrb[0].mxu0
        %v1294 = vpop.f32.mrb[0].mxu0
        %v1295 = vadd.f32 %v1111, %v1294
        %v1296 = vpop.f32.mrb[0].mxu0
        %1297 = vmatprep.mubr.bf16.mxu0 0
        %1298 = vmatmul.mubr.bf16.gmra.mrb[0].mxu0 %v1071
        %v1299 = vpop.f32.mrb[0].mxu0
        %v1300 = vadd.f32 %v1111, %v1299
        %v1301 = vpop.f32.mrb[0].mxu0
        %v1302 = vpop.f32.mrb[0].mxu0
        %v1303 = vadd.f32 %v1111, %v1302
        %v1304 = vpop.f32.mrb[0].mxu0
        %1305 = vmatprep.mubr.bf16.mxu0 0
        %1306 = vmatmul.mubr.bf16.gmra.mrb[0].mxu0 %v1072
        %v1307 = vpop.f32.mrb[0].mxu0
        %v1308 = vadd.f32 %v1111, %v1307
        %v1309 = vpop.f32.mrb[0].mxu0
        %v1310 = vpop.f32.mrb[0].mxu0
        %v1311 = vadd.f32 %v1111, %v1310
        %v1312 = vpop.f32.mrb[0].mxu0
        %1313 = vmatprep.mubr.bf16.mxu0 0
        %1314 = vmatmul.mubr.bf16.gmra.mrb[0].mxu0 %v1073
        %v1315 = vpop.f32.mrb[0].mxu0
        %v1316 = vadd.f32 %v1111, %v1315
        %v1317 = vpop.f32.mrb[0].mxu0
        %v1318 = vpop.f32.mrb[0].mxu0
        %v1319 = vadd.f32 %v1111, %v1318
        %v1320 = vpop.f32.mrb[0].mxu0
        %1321 = vmatprep.mubr.bf16.mxu0 0
        %1322 = vmatmul.mubr.bf16.gmra.mrb[0].mxu0 %v1074
        %v1323 = vpop.f32.mrb[0].mxu0
        %v1324 = vadd.f32 %v1111, %v1323
        %v1325 = vpop.f32.mrb[0].mxu0
        %v1326 = vpop.f32.mrb[0].mxu0
        %v1327 = vadd.f32 %v1111, %v1326
        %v1328 = vpop.f32.mrb[0].mxu0
        %1329 = vmatprep.mubr.bf16.mxu0 0
        %1330 = vmatmul.mubr.bf16.gmra.mrb[0].mxu0 %v1075
        %v1331 = vpop.f32.mrb[0].mxu0
        %v1332 = vadd.f32 %v1111, %v1331
        %v1333 = vpop.f32.mrb[0].mxu0
        %v1334 = vpop.f32.mrb[0].mxu0
        %v1335 = vadd.f32 %v1111, %v1334
        %v1336 = vpop.f32.mrb[0].mxu0
        %1337 = vmatprep.mubr.bf16.mxu0 0
        %1338 = vmatmul.mubr.bf16.gmra.mrb[0].mxu0 %v1076
        %v1339 = vpop.f32.mrb[0].mxu0
        %v1340 = vadd.f32 %v1111, %v1339
        %v1341 = vpop.f32.mrb[0].mxu0
        %v1342 = vpop.f32.mrb[0].mxu0
        %v1343 = vadd.f32 %v1111, %v1342
        %v1344 = vpop.f32.mrb[0].mxu0
        %1345 = vmatprep.mubr.bf16.mxu0 0
        %1346 = vmatmul.mubr.bf16.gmra.mrb[0].mxu0 %v1077
        %v1347 = vpop.f32.mrb[0].mxu0
        %v1348 = vadd.f32 %v1111, %v1347
        %v1349 = vpop.f32.mrb[0].mxu0
        %v1350 = vpop.f32.mrb[0].mxu0
        %v1351 = vadd.f32 %v1111, %v1350
        %v1352 = vpop.f32.mrb[0].mxu0
        %1353 = vmatprep.mubr.bf16.mxu0 0
        %1354 = vmatmul.mubr.bf16.gmra.mrb[0].mxu0 %v1078
        %v1355 = vpop.f32.mrb[0].mxu0
        %v1356 = vadd.f32 %v1111, %v1355
        %v1357 = vpop.f32.mrb[0].mxu0
        %v1358 = vpop.f32.mrb[0].mxu0
        %v1359 = vadd.f32 %v1111, %v1358
        %v1360 = vpop.f32.mrb[0].mxu0
        %1361 = vmatprep.mubr.bf16.mxu0 0
        %1362 = vmatmul.mubr.bf16.gmra.mrb[0].mxu0 %v1079
        %v1363 = vpop.f32.mrb[0].mxu0
        %v1364 = vadd.f32 %v1111, %v1363
        %v1365 = vpop.f32.mrb[0].mxu0
        %v1366 = vpop.f32.mrb[0].mxu0
        %v1367 = vadd.f32 %v1111, %v1366
        %v1368 = vpop.f32.mrb[0].mxu0
        %1369 = vmatprep.mubr.bf16.mxu0 0
        %1370 = vmatmul.mubr.bf16.gmra.mrb[0].mxu0 %v1080
        %v1371 = vpop.f32.mrb[0].mxu0
        %v1372 = vadd.f32 %v1111, %v1371
        %v1373 = vpop.f32.mrb[0].mxu0
        %v1374 = vpop.f32.mrb[0].mxu0
        %v1375 = vadd.f32 %v1111, %v1374
        %v1376 = vpop.f32.mrb[0].mxu0
        %1377 = vmatprep.mubr.bf16.mxu0 0
        %1378 = vmatmul.mubr.bf16.gmra.mrb[0].mxu0 %v1081
        %v1379 = vpop.f32.mrb[0].mxu0
        %v1380 = vadd.f32 %v1111, %v1379
        %v1381 = vpop.f32.mrb[0].mxu0
        %v1382 = vpop.f32.mrb[0].mxu0
        %v1383 = vadd.f32 %v1111, %v1382
        %v1384 = vpop.f32.mrb[0].mxu0
        %1385 = vmatprep.mubr.bf16.mxu0 0
        %1386 = vmatmul.mubr.bf16.gmra.mrb[0].mxu0 %v1082
        %v1387 = vpop.f32.mrb[0].mxu0
        %v1388 = vadd.f32 %v1111, %v1387
        %v1389 = vpop.f32.mrb[0].mxu0
        %v1390 = vpop.f32.mrb[0].mxu0
        %v1391 = vadd.f32 %v1111, %v1390
        %v1392 = vpop.f32.mrb[0].mxu0
        %1393 = vmatprep.mubr.bf16.mxu0 0
        %1394 = vmatmul.mubr.bf16.gmra.mrb[0].mxu0 %v1083
        %v1395 = vpop.f32.mrb[0].mxu0
        %v1396 = vadd.f32 %v1111, %v1395
        %v1397 = vpop.f32.mrb[0].mxu0
        %v1398 = vpop.f32.mrb[0].mxu0
        %v1399 = vadd.f32 %v1111, %v1398
        %v1400 = vpop.f32.mrb[0].mxu0
        %1401 = vmatprep.mubr.bf16.mxu0 0
        %1402 = vmatmul.mubr.bf16.gmra.mrb[0].mxu0 %v1084
        %v1403 = vpop.f32.mrb[0].mxu0
        %v1404 = vadd.f32 %v1111, %v1403
        %v1405 = vpop.f32.mrb[0].mxu0
        %v1406 = vpop.f32.mrb[0].mxu0
        %v1407 = vadd.f32 %v1111, %v1406
        %v1408 = vpop.f32.mrb[0].mxu0
        %1409 = vmatprep.mubr.bf16.mxu0 0
        %1410 = vmatmul.mubr.bf16.gmra.mrb[0].mxu0 %v1085
        %v1411 = vpop.f32.mrb[0].mxu0
        %v1412 = vadd.f32 %v1111, %v1411
        %v1413 = vpop.f32.mrb[0].mxu0
        %v1414 = vpop.f32.mrb[0].mxu0
        %v1415 = vadd.f32 %v1111, %v1414
        %v1416 = vpop.f32.mrb[0].mxu0
        %1417 = vmatprep.mubr.bf16.mxu0 0
        %1418 = vmatmul.mubr.bf16.gmra.mrb[0].mxu0 %v1086
        %v1419 = vpop.f32.mrb[0].mxu0
        %v1420 = vadd.f32 %v1111, %v1419
        %v1421 = vpop.f32.mrb[0].mxu0
        %v1422 = vpop.f32.mrb[0].mxu0
        %v1423 = vadd.f32 %v1111, %v1422
        %v1424 = vpop.f32.mrb[0].mxu0
        %1425 = vmatprep.mubr.bf16.mxu0 0
        %1426 = vmatmul.mubr.bf16.gmra.mrb[0].mxu0 %v1087
        %v1427 = vpop.f32.mrb[0].mxu0
        %v1428 = vadd.f32 %v1111, %v1427
        %v1429 = vpop.f32.mrb[0].mxu0
        %v1430 = vpop.f32.mrb[0].mxu0
        %v1431 = vadd.f32 %v1111, %v1430
        %v1432 = vpop.f32.mrb[0].mxu0
        %1433 = vmatprep.mubr.bf16.mxu0 0
        %1434 = vmatmul.mubr.bf16.gmra.mrb[0].mxu0 %v1088
        %v1435 = vpop.f32.mrb[0].mxu0
        %v1436 = vadd.f32 %v1111, %v1435
        %v1437 = vpop.f32.mrb[0].mxu0
        %v1438 = vpop.f32.mrb[0].mxu0
        %v1439 = vadd.f32 %v1111, %v1438
        %v1440 = vpop.f32.mrb[0].mxu0
        %1441 = vmatprep.mubr.bf16.mxu0 0
        %1442 = vmatmul.mubr.bf16.gmra.mrb[0].mxu0 %v1089
        %v1443 = vpop.f32.mrb[0].mxu0
        %v1444 = vadd.f32 %v1111, %v1443
        %v1445 = vpop.f32.mrb[0].mxu0
        %v1446 = vpop.f32.mrb[0].mxu0
        %v1447 = vadd.f32 %v1111, %v1446
        %v1448 = vpop.f32.mrb[0].mxu0
        %1449 = vdwg.mxu0
        %v1450 = vld [vmem:[%s6] sm:$0x1]
        %vm1451 = vcmp.gt.f32.partialorder %v1450, 0.5
        %v1452 = vxor.u32 %v1196, 2147483648
        %v1453 = vxor.u32 %v1199, 2147483648
        %v1454 = vxor.u32 %v1204, 2147483648
        %v1455 = vxor.u32 %v1207, 2147483648
        %v1456 = vxor.u32 %v1212, 2147483648
        %v1457 = vxor.u32 %v1215, 2147483648
        %v1458 = vxor.u32 %v1220, 2147483648
        %v1459 = vxor.u32 %v1223, 2147483648
        %v1460 = vxor.u32 %v1228, 2147483648
        %v1461 = vxor.u32 %v1231, 2147483648
        %v1462 = vxor.u32 %v1236, 2147483648
        %v1463 = vxor.u32 %v1239, 2147483648
        %v1464 = vxor.u32 %v1244, 2147483648
        %v1465 = vxor.u32 %v1247, 2147483648
        %v1466 = vxor.u32 %v1252, 2147483648
        %v1467 = vxor.u32 %v1255, 2147483648
        %v1468 = vxor.u32 %v1260, 2147483648
        %v1469 = vxor.u32 %v1263, 2147483648
        %v1470 = vxor.u32 %v1268, 2147483648
        %v1471 = vxor.u32 %v1271, 2147483648
        %v1472 = vxor.u32 %v1276, 2147483648
        %v1473 = vxor.u32 %v1279, 2147483648
        %v1474 = vxor.u32 %v1284, 2147483648
        %v1475 = vxor.u32 %v1287, 2147483648
        %v1476 = vxor.u32 %v1292, 2147483648
        %v1477 = vxor.u32 %v1295, 2147483648
        %v1478 = vxor.u32 %v1300, 2147483648
        %v1479 = vxor.u32 %v1303, 2147483648
        %v1480 = vxor.u32 %v1308, 2147483648
        %v1481 = vxor.u32 %v1311, 2147483648
        %v1482 = vxor.u32 %v1316, 2147483648
        %v1483 = vxor.u32 %v1319, 2147483648
        %v1484 = vxor.u32 %v1324, 2147483648
        %v1485 = vxor.u32 %v1327, 2147483648
        %v1486 = vxor.u32 %v1332, 2147483648
        %v1487 = vxor.u32 %v1335, 2147483648
        %v1488 = vxor.u32 %v1340, 2147483648
        %v1489 = vxor.u32 %v1343, 2147483648
        %v1490 = vxor.u32 %v1348, 2147483648
        %v1491 = vxor.u32 %v1351, 2147483648
        %v1492 = vxor.u32 %v1356, 2147483648
        %v1493 = vxor.u32 %v1359, 2147483648
        %v1494 = vxor.u32 %v1364, 2147483648
        %v1495 = vxor.u32 %v1367, 2147483648
        %v1496 = vxor.u32 %v1372, 2147483648
        %v1497 = vxor.u32 %v1375, 2147483648
        %v1498 = vxor.u32 %v1380, 2147483648
        %v1499 = vxor.u32 %v1383, 2147483648
        %v1500 = vxor.u32 %v1388, 2147483648
        %v1501 = vxor.u32 %v1391, 2147483648
        %v1502 = vxor.u32 %v1396, 2147483648
        %v1503 = vxor.u32 %v1399, 2147483648
        %v1504 = vxor.u32 %v1404, 2147483648
        %v1505 = vxor.u32 %v1407, 2147483648
        %v1506 = vxor.u32 %v1412, 2147483648
        %v1507 = vxor.u32 %v1415, 2147483648
        %v1508 = vxor.u32 %v1420, 2147483648
        %v1509 = vxor.u32 %v1423, 2147483648
        %v1510 = vxor.u32 %v1428, 2147483648
        %v1511 = vxor.u32 %v1431, 2147483648
        %v1512 = vxor.u32 %v1436, 2147483648
        %v1513 = vxor.u32 %v1439, 2147483648
        %v1514 = vxor.u32 %v1444, 2147483648
        %v1515 = vxor.u32 %v1447, 2147483648
        %v1516 = vmul.f32 %v1452, 1.442695
        %v1517 = vpow.pop %v1516
        %v1518 = vmul.f32 %v1453, 1.442695
        %v1519 = vpow.pop %v1518
        %v1520 = vmul.f32 %v1454, 1.442695
        %v1521 = vpow.pop %v1520
        %v1522 = vmul.f32 %v1455, 1.442695
        %v1523 = vpow.pop %v1522
        %v1524 = vmul.f32 %v1456, 1.442695
        %v1525 = vpow.pop %v1524
        %v1526 = vmul.f32 %v1457, 1.442695
        %v1527 = vpow.pop %v1526
        %v1528 = vmul.f32 %v1458, 1.442695
        %v1529 = vpow.pop %v1528
        %v1530 = vmul.f32 %v1459, 1.442695
        %v1531 = vpow.pop %v1530
        %v1532 = vmul.f32 %v1460, 1.442695
        %v1533 = vpow.pop %v1532
        %v1534 = vmul.f32 %v1461, 1.442695
        %v1535 = vpow.pop %v1534
        %v1536 = vmul.f32 %v1462, 1.442695
        %v1537 = vpow.pop %v1536
        %v1538 = vmul.f32 %v1463, 1.442695
        %v1539 = vpow.pop %v1538
        %v1540 = vmul.f32 %v1464, 1.442695
        %v1541 = vpow.pop %v1540
        %v1542 = vmul.f32 %v1465, 1.442695
        %v1543 = vpow.pop %v1542
        %v1544 = vmul.f32 %v1466, 1.442695
        %v1545 = vpow.pop %v1544
        %v1546 = vmul.f32 %v1467, 1.442695
        %v1547 = vpow.pop %v1546
        %v1548 = vmul.f32 %v1468, 1.442695
        %v1549 = vpow.pop %v1548
        %v1550 = vmul.f32 %v1469, 1.442695
        %v1551 = vpow.pop %v1550
        %v1552 = vmul.f32 %v1470, 1.442695
        %v1553 = vpow.pop %v1552
        %v1554 = vmul.f32 %v1471, 1.442695
        %v1555 = vpow.pop %v1554
        %v1556 = vmul.f32 %v1472, 1.442695
        %v1557 = vpow.pop %v1556
        %v1558 = vmul.f32 %v1473, 1.442695
        %v1559 = vpow.pop %v1558
        %v1560 = vmul.f32 %v1474, 1.442695
        %v1561 = vpow.pop %v1560
        %v1562 = vmul.f32 %v1475, 1.442695
        %v1563 = vpow.pop %v1562
        %v1564 = vmul.f32 %v1476, 1.442695
        %v1565 = vpow.pop %v1564
        %v1566 = vmul.f32 %v1477, 1.442695
        %v1567 = vpow.pop %v1566
        %v1568 = vmul.f32 %v1478, 1.442695
        %v1569 = vpow.pop %v1568
        %v1570 = vmul.f32 %v1479, 1.442695
        %v1571 = vpow.pop %v1570
        %v1572 = vmul.f32 %v1480, 1.442695
        %v1573 = vpow.pop %v1572
        %v1574 = vmul.f32 %v1481, 1.442695
        %v1575 = vpow.pop %v1574
        %v1576 = vmul.f32 %v1482, 1.442695
        %v1577 = vpow.pop %v1576
        %v1578 = vmul.f32 %v1483, 1.442695
        %v1579 = vpow.pop %v1578
        %v1580 = vmul.f32 %v1484, 1.442695
        %v1581 = vpow.pop %v1580
        %v1582 = vmul.f32 %v1485, 1.442695
        %v1583 = vpow.pop %v1582
        %v1584 = vmul.f32 %v1486, 1.442695
        %v1585 = vpow.pop %v1584
        %v1586 = vmul.f32 %v1487, 1.442695
        %v1587 = vpow.pop %v1586
        %v1588 = vmul.f32 %v1488, 1.442695
        %v1589 = vpow.pop %v1588
        %v1590 = vmul.f32 %v1489, 1.442695
        %v1591 = vpow.pop %v1590
        %v1592 = vmul.f32 %v1490, 1.442695
        %v1593 = vpow.pop %v1592
        %v1594 = vmul.f32 %v1491, 1.442695
        %v1595 = vpow.pop %v1594
        %v1596 = vmul.f32 %v1492, 1.442695
        %v1597 = vpow.pop %v1596
        %v1598 = vmul.f32 %v1493, 1.442695
        %v1599 = vpow.pop %v1598
        %v1600 = vmul.f32 %v1494, 1.442695
        %v1601 = vpow.pop %v1600
        %v1602 = vmul.f32 %v1495, 1.442695
        %v1603 = vpow.pop %v1602
        %v1604 = vmul.f32 %v1496, 1.442695
        %v1605 = vpow.pop %v1604
        %v1606 = vmul.f32 %v1497, 1.442695
        %v1607 = vpow.pop %v1606
        %v1608 = vmul.f32 %v1498, 1.442695
        %v1609 = vpow.pop %v1608
        %v1610 = vmul.f32 %v1499, 1.442695
        %v1611 = vpow.pop %v1610
        %v1612 = vmul.f32 %v1500, 1.442695
        %v1613 = vpow.pop %v1612
        %v1614 = vmul.f32 %v1501, 1.442695
        %v1615 = vpow.pop %v1614
        %v1616 = vmul.f32 %v1502, 1.442695
        %v1617 = vpow.pop %v1616
        %v1618 = vmul.f32 %v1503, 1.442695
        %v1619 = vpow.pop %v1618
        %v1620 = vmul.f32 %v1504, 1.442695
        %v1621 = vpow.pop %v1620
        %v1622 = vmul.f32 %v1505, 1.442695
        %v1623 = vpow.pop %v1622
        %v1624 = vmul.f32 %v1506, 1.442695
        %v1625 = vpow.pop %v1624
        %v1626 = vmul.f32 %v1507, 1.442695
        %v1627 = vpow.pop %v1626
        %v1628 = vmul.f32 %v1508, 1.442695
        %v1629 = vpow.pop %v1628
        %v1630 = vmul.f32 %v1509, 1.442695
        %v1631 = vpow.pop %v1630
        %v1632 = vmul.f32 %v1510, 1.442695
        %v1633 = vpow.pop %v1632
        %v1634 = vmul.f32 %v1511, 1.442695
        %v1635 = vpow.pop %v1634
        %v1636 = vmul.f32 %v1512, 1.442695
        %v1637 = vpow.pop %v1636
        %v1638 = vmul.f32 %v1513, 1.442695
        %v1639 = vpow.pop %v1638
        %v1640 = vmul.f32 %v1514, 1.442695
        %v1641 = vpow.pop %v1640
        %v1642 = vmul.f32 %v1515, 1.442695
        %v1643 = vpow.pop %v1642
        %v1644 = vadd.f32 %v1517, 1.0
        %v1645 = vadd.f32 %v1519, 1.0
        %v1646 = vadd.f32 %v1521, 1.0
        %v1647 = vadd.f32 %v1523, 1.0
        %v1648 = vadd.f32 %v1525, 1.0
        %v1649 = vadd.f32 %v1527, 1.0
        %v1650 = vadd.f32 %v1529, 1.0
        %v1651 = vadd.f32 %v1531, 1.0
        %v1652 = vadd.f32 %v1533, 1.0
        %v1653 = vadd.f32 %v1535, 1.0
        %v1654 = vadd.f32 %v1537, 1.0
        %v1655 = vadd.f32 %v1539, 1.0
        %v1656 = vadd.f32 %v1541, 1.0
        %v1657 = vadd.f32 %v1543, 1.0
        %v1658 = vadd.f32 %v1545, 1.0
        %v1659 = vadd.f32 %v1547, 1.0
        %v1660 = vadd.f32 %v1549, 1.0
        %v1661 = vadd.f32 %v1551, 1.0
        %v1662 = vadd.f32 %v1553, 1.0
        %v1663 = vadd.f32 %v1555, 1.0
        %v1664 = vadd.f32 %v1557, 1.0
        %v1665 = vadd.f32 %v1559, 1.0
        %v1666 = vadd.f32 %v1561, 1.0
        %v1667 = vadd.f32 %v1563, 1.0
        %v1668 = vadd.f32 %v1565, 1.0
        %v1669 = vadd.f32 %v1567, 1.0
        %v1670 = vadd.f32 %v1569, 1.0
        %v1671 = vadd.f32 %v1571, 1.0
        %v1672 = vadd.f32 %v1573, 1.0
        %v1673 = vadd.f32 %v1575, 1.0
        %v1674 = vadd.f32 %v1577, 1.0
        %v1675 = vadd.f32 %v1579, 1.0
        %v1676 = vadd.f32 %v1581, 1.0
        %v1677 = vadd.f32 %v1583, 1.0
        %v1678 = vadd.f32 %v1585, 1.0
        %v1679 = vadd.f32 %v1587, 1.0
        %v1680 = vadd.f32 %v1589, 1.0
        %v1681 = vadd.f32 %v1591, 1.0
        %v1682 = vadd.f32 %v1593, 1.0
        %v1683 = vadd.f32 %v1595, 1.0
        %v1684 = vadd.f32 %v1597, 1.0
        %v1685 = vadd.f32 %v1599, 1.0
        %v1686 = vadd.f32 %v1601, 1.0
        %v1687 = vadd.f32 %v1603, 1.0
        %v1688 = vadd.f32 %v1605, 1.0
        %v1689 = vadd.f32 %v1607, 1.0
        %v1690 = vadd.f32 %v1609, 1.0
        %v1691 = vadd.f32 %v1611, 1.0
        %v1692 = vadd.f32 %v1613, 1.0
        %v1693 = vadd.f32 %v1615, 1.0
        %v1694 = vadd.f32 %v1617, 1.0
        %v1695 = vadd.f32 %v1619, 1.0
        %v1696 = vadd.f32 %v1621, 1.0
        %v1697 = vadd.f32 %v1623, 1.0
        %v1698 = vadd.f32 %v1625, 1.0
        %v1699 = vadd.f32 %v1627, 1.0
        %v1700 = vadd.f32 %v1629, 1.0
        %v1701 = vadd.f32 %v1631, 1.0
        %v1702 = vadd.f32 %v1633, 1.0
        %v1703 = vadd.f32 %v1635, 1.0
        %v1704 = vadd.f32 %v1637, 1.0
        %v1705 = vadd.f32 %v1639, 1.0
        %v1706 = vadd.f32 %v1641, 1.0
        %v1707 = vadd.f32 %v1643, 1.0
        %v1708 = vrcp.pop %v1644
        %v1709 = vmul.f32 1.0, %v1708
        %v1710 = vrcp.pop %v1645
        %v1711 = vmul.f32 1.0, %v1710
        %v1712 = vrcp.pop %v1646
        %v1713 = vmul.f32 1.0, %v1712
        %v1714 = vrcp.pop %v1647
        %v1715 = vmul.f32 1.0, %v1714
        %v1716 = vrcp.pop %v1648
        %v1717 = vmul.f32 1.0, %v1716
        %v1718 = vrcp.pop %v1649
        %v1719 = vmul.f32 1.0, %v1718
        %v1720 = vrcp.pop %v1650
        %v1721 = vmul.f32 1.0, %v1720
        %v1722 = vrcp.pop %v1651
        %v1723 = vmul.f32 1.0, %v1722
        %v1724 = vrcp.pop %v1652
        %v1725 = vmul.f32 1.0, %v1724
        %v1726 = vrcp.pop %v1653
        %v1727 = vmul.f32 1.0, %v1726
        %v1728 = vrcp.pop %v1654
        %v1729 = vmul.f32 1.0, %v1728
        %v1730 = vrcp.pop %v1655
        %v1731 = vmul.f32 1.0, %v1730
        %v1732 = vrcp.pop %v1656
        %v1733 = vmul.f32 1.0, %v1732
        %v1734 = vrcp.pop %v1657
        %v1735 = vmul.f32 1.0, %v1734
        %v1736 = vrcp.pop %v1658
        %v1737 = vmul.f32 1.0, %v1736
        %v1738 = vrcp.pop %v1659
        %v1739 = vmul.f32 1.0, %v1738
        %v1740 = vrcp.pop %v1660
        %v1741 = vmul.f32 1.0, %v1740
        %v1742 = vrcp.pop %v1661
        %v1743 = vmul.f32 1.0, %v1742
        %v1744 = vrcp.pop %v1662
        %v1745 = vmul.f32 1.0, %v1744
        %v1746 = vrcp.pop %v1663
        %v1747 = vmul.f32 1.0, %v1746
        %v1748 = vrcp.pop %v1664
        %v1749 = vmul.f32 1.0, %v1748
        %v1750 = vrcp.pop %v1665
        %v1751 = vmul.f32 1.0, %v1750
        %v1752 = vrcp.pop %v1666
        %v1753 = vmul.f32 1.0, %v1752
        %v1754 = vrcp.pop %v1667
        %v1755 = vmul.f32 1.0, %v1754
        %v1756 = vrcp.pop %v1668
        %v1757 = vmul.f32 1.0, %v1756
        %v1758 = vrcp.pop %v1669
        %v1759 = vmul.f32 1.0, %v1758
        %v1760 = vrcp.pop %v1670
        %v1761 = vmul.f32 1.0, %v1760
        %v1762 = vrcp.pop %v1671
        %v1763 = vmul.f32 1.0, %v1762
        %v1764 = vrcp.pop %v1672
        %v1765 = vmul.f32 1.0, %v1764
        %v1766 = vrcp.pop %v1673
        %v1767 = vmul.f32 1.0, %v1766
        %v1768 = vrcp.pop %v1674
        %v1769 = vmul.f32 1.0, %v1768
        %v1770 = vrcp.pop %v1675
        %v1771 = vmul.f32 1.0, %v1770
        %v1772 = vrcp.pop %v1676
        %v1773 = vmul.f32 1.0, %v1772
        %v1774 = vrcp.pop %v1677
        %v1775 = vmul.f32 1.0, %v1774
        %v1776 = vrcp.pop %v1678
        %v1777 = vmul.f32 1.0, %v1776
        %v1778 = vrcp.pop %v1679
        %v1779 = vmul.f32 1.0, %v1778
        %v1780 = vrcp.pop %v1680
        %v1781 = vmul.f32 1.0, %v1780
        %v1782 = vrcp.pop %v1681
        %v1783 = vmul.f32 1.0, %v1782
        %v1784 = vrcp.pop %v1682
        %v1785 = vmul.f32 1.0, %v1784
        %v1786 = vrcp.pop %v1683
        %v1787 = vmul.f32 1.0, %v1786
        %v1788 = vrcp.pop %v1684
        %v1789 = vmul.f32 1.0, %v1788
        %v1790 = vrcp.pop %v1685
        %v1791 = vmul.f32 1.0, %v1790
        %v1792 = vrcp.pop %v1686
        %v1793 = vmul.f32 1.0, %v1792
        %v1794 = vrcp.pop %v1687
        %v1795 = vmul.f32 1.0, %v1794
        %v1796 = vrcp.pop %v1688
        %v1797 = vmul.f32 1.0, %v1796
        %v1798 = vrcp.pop %v1689
        %v1799 = vmul.f32 1.0, %v1798
        %v1800 = vrcp.pop %v1690
        %v1801 = vmul.f32 1.0, %v1800
        %v1802 = vrcp.pop %v1691
        %v1803 = vmul.f32 1.0, %v1802
        %v1804 = vrcp.pop %v1692
        %v1805 = vmul.f32 1.0, %v1804
        %v1806 = vrcp.pop %v1693
        %v1807 = vmul.f32 1.0, %v1806
        %v1808 = vrcp.pop %v1694
        %v1809 = vmul.f32 1.0, %v1808
        %v1810 = vrcp.pop %v1695
        %v1811 = vmul.f32 1.0, %v1810
        %v1812 = vrcp.pop %v1696
        %v1813 = vmul.f32 1.0, %v1812
        %v1814 = vrcp.pop %v1697
        %v1815 = vmul.f32 1.0, %v1814
        %v1816 = vrcp.pop %v1698
        %v1817 = vmul.f32 1.0, %v1816
        %v1818 = vrcp.pop %v1699
        %v1819 = vmul.f32 1.0, %v1818
        %v1820 = vrcp.pop %v1700
        %v1821 = vmul.f32 1.0, %v1820
        %v1822 = vrcp.pop %v1701
        %v1823 = vmul.f32 1.0, %v1822
        %v1824 = vrcp.pop %v1702
        %v1825 = vmul.f32 1.0, %v1824
        %v1826 = vrcp.pop %v1703
        %v1827 = vmul.f32 1.0, %v1826
        %v1828 = vrcp.pop %v1704
        %v1829 = vmul.f32 1.0, %v1828
        %v1830 = vrcp.pop %v1705
        %v1831 = vmul.f32 1.0, %v1830
        %v1832 = vrcp.pop %v1706
        %v1833 = vmul.f32 1.0, %v1832
        %v1834 = vrcp.pop %v1707
        %v1835 = vmul.f32 1.0, %v1834
        %v1836 = vsel %vm1451, 1, 0
        %v1837 = vlaneseq
        %v1838 = vshrl.u32 %v1837, 7
        %v1839 = vsub.s32 0, %v1838
        %v1840 = vrot.slane %v1836, %v1839
        %vm1841 = vcmp.eq.s32.totalorder %v1840, 1
        %v1842 = vsel %vm1841, %v1709, %v1196
        %v1843 = vsel %vm1841, %v1711, %v1199
        %v1844 = vsel %vm1841, %v1713, %v1204
        %v1845 = vsel %vm1841, %v1715, %v1207
        %v1846 = vsel %vm1841, %v1717, %v1212
        %v1847 = vsel %vm1841, %v1719, %v1215
        %v1848 = vsel %vm1841, %v1721, %v1220
        %v1849 = vsel %vm1841, %v1723, %v1223
        %v1850 = vsel %vm1841, %v1725, %v1228
        %v1851 = vsel %vm1841, %v1727, %v1231
        %v1852 = vsel %vm1841, %v1729, %v1236
        %v1853 = vsel %vm1841, %v1731, %v1239
        %v1854 = vsel %vm1841, %v1733, %v1244
        %v1855 = vsel %vm1841, %v1735, %v1247
        %v1856 = vsel %vm1841, %v1737, %v1252
        %v1857 = vsel %vm1841, %v1739, %v1255
        %v1858 = vsel %vm1841, %v1741, %v1260
        %v1859 = vsel %vm1841, %v1743, %v1263
        %v1860 = vsel %vm1841, %v1745, %v1268
        %v1861 = vsel %vm1841, %v1747, %v1271
        %v1862 = vsel %vm1841, %v1749, %v1276
        %v1863 = vsel %vm1841, %v1751, %v1279
        %v1864 = vsel %vm1841, %v1753, %v1284
        %v1865 = vsel %vm1841, %v1755, %v1287
        %v1866 = vsel %vm1841, %v1757, %v1292
        %v1867 = vsel %vm1841, %v1759, %v1295
        %v1868 = vsel %vm1841, %v1761, %v1300
        %v1869 = vsel %vm1841, %v1763, %v1303
        %v1870 = vsel %vm1841, %v1765, %v1308
        %v1871 = vsel %vm1841, %v1767, %v1311
        %v1872 = vsel %vm1841, %v1769, %v1316
        %v1873 = vsel %vm1841, %v1771, %v1319
        %v1874 = vsel %vm1841, %v1773, %v1324
        %v1875 = vsel %vm1841, %v1775, %v1327
        %v1876 = vsel %vm1841, %v1777, %v1332
        %v1877 = vsel %vm1841, %v1779, %v1335
        %v1878 = vsel %vm1841, %v1781, %v1340
        %v1879 = vsel %vm1841, %v1783, %v1343
        %v1880 = vsel %vm1841, %v1785, %v1348
        %v1881 = vsel %vm1841, %v1787, %v1351
        %v1882 = vsel %vm1841, %v1789, %v1356
        %v1883 = vsel %vm1841, %v1791, %v1359
        %v1884 = vsel %vm1841, %v1793, %v1364
        %v1885 = vsel %vm1841, %v1795, %v1367
        %v1886 = vsel %vm1841, %v1797, %v1372
        %v1887 = vsel %vm1841, %v1799, %v1375
        %v1888 = vsel %vm1841, %v1801, %v1380
        %v1889 = vsel %vm1841, %v1803, %v1383
        %v1890 = vsel %vm1841, %v1805, %v1388
        %v1891 = vsel %vm1841, %v1807, %v1391
        %v1892 = vsel %vm1841, %v1809, %v1396
        %v1893 = vsel %vm1841, %v1811, %v1399
        %v1894 = vsel %vm1841, %v1813, %v1404
        %v1895 = vsel %vm1841, %v1815, %v1407
        %v1896 = vsel %vm1841, %v1817, %v1412
        %v1897 = vsel %vm1841, %v1819, %v1415
        %v1898 = vsel %vm1841, %v1821, %v1420
        %v1899 = vsel %vm1841, %v1823, %v1423
        %v1900 = vsel %vm1841, %v1825, %v1428
        %v1901 = vsel %vm1841, %v1827, %v1431
        %v1902 = vsel %vm1841, %v1829, %v1436
        %v1903 = vsel %vm1841, %v1831, %v1439
        %v1904 = vsel %vm1841, %v1833, %v1444
        %v1905 = vsel %vm1841, %v1835, %v1447
        %v1906 = vadd.f32 %v994, %v1842
        %v1907 = vadd.f32 %v995, %v1843
        %v1908 = vadd.f32 %v996, %v1844
        %v1909 = vadd.f32 %v997, %v1845
        %v1910 = vadd.f32 %v998, %v1846
        %v1911 = vadd.f32 %v999, %v1847
        %v1912 = vadd.f32 %v1000, %v1848
        %v1913 = vadd.f32 %v1001, %v1849
        %v1914 = vadd.f32 %v1002, %v1850
        %v1915 = vadd.f32 %v1003, %v1851
        %v1916 = vadd.f32 %v1004, %v1852
        %v1917 = vadd.f32 %v1005, %v1853
        %v1918 = vadd.f32 %v1006, %v1854
        %v1919 = vadd.f32 %v1007, %v1855
        %v1920 = vadd.f32 %v1008, %v1856
        %v1921 = vadd.f32 %v1009, %v1857
        %v1922 = vadd.f32 %v1010, %v1858
        %v1923 = vadd.f32 %v1011, %v1859
        %v1924 = vadd.f32 %v1012, %v1860
        %v1925 = vadd.f32 %v1013, %v1861
        %v1926 = vadd.f32 %v1014, %v1862
        %v1927 = vadd.f32 %v1015, %v1863
        %v1928 = vadd.f32 %v1016, %v1864
        %v1929 = vadd.f32 %v1017, %v1865
        %v1930 = vadd.f32 %v1018, %v1866
        %v1931 = vadd.f32 %v1019, %v1867
        %v1932 = vadd.f32 %v1020, %v1868
        %v1933 = vadd.f32 %v1021, %v1869
        %v1934 = vadd.f32 %v1022, %v1870
        %v1935 = vadd.f32 %v1023, %v1871
        %v1936 = vadd.f32 %v1024, %v1872
        %v1937 = vadd.f32 %v1025, %v1873
        %v1938 = vadd.f32 %v1026, %v1874
        %v1939 = vadd.f32 %v1027, %v1875
        %v1940 = vadd.f32 %v1028, %v1876
        %v1941 = vadd.f32 %v1029, %v1877
        %v1942 = vadd.f32 %v1030, %v1878
        %v1943 = vadd.f32 %v1031, %v1879
        %v1944 = vadd.f32 %v1032, %v1880
        %v1945 = vadd.f32 %v1033, %v1881
        %v1946 = vadd.f32 %v1034, %v1882
        %v1947 = vadd.f32 %v1035, %v1883
        %v1948 = vadd.f32 %v1036, %v1884
        %v1949 = vadd.f32 %v1037, %v1885
        %v1950 = vadd.f32 %v1038, %v1886
        %v1951 = vadd.f32 %v1039, %v1887
        %v1952 = vadd.f32 %v1040, %v1888
        %v1953 = vadd.f32 %v1041, %v1889
        %v1954 = vadd.f32 %v1042, %v1890
        %v1955 = vadd.f32 %v1043, %v1891
        %v1956 = vadd.f32 %v1044, %v1892
        %v1957 = vadd.f32 %v1045, %v1893
        %v1958 = vadd.f32 %v1046, %v1894
        %v1959 = vadd.f32 %v1047, %v1895
        %v1960 = vadd.f32 %v1048, %v1896
        %v1961 = vadd.f32 %v1049, %v1897
        %v1962 = vadd.f32 %v1050, %v1898
        %v1963 = vadd.f32 %v1051, %v1899
        %v1964 = vadd.f32 %v1052, %v1900
        %v1965 = vadd.f32 %v1053, %v1901
        %v1966 = vadd.f32 %v1054, %v1902
        %v1967 = vadd.f32 %v1055, %v1903
        %v1968 = vadd.f32 %v1056, %v1904
        %v1969 = vadd.f32 %v1057, %v1905
        %v1970 = vpack.c.bf16 %v1907, %v1906
        %v1971 = vpack.c.bf16 %v1909, %v1908
        %v1972 = vpack.c.bf16 %v1911, %v1910
        %v1973 = vpack.c.bf16 %v1913, %v1912
        %v1974 = vpack.c.bf16 %v1915, %v1914
        %v1975 = vpack.c.bf16 %v1917, %v1916
        %v1976 = vpack.c.bf16 %v1919, %v1918
        %v1977 = vpack.c.bf16 %v1921, %v1920
        %v1978 = vpack.c.bf16 %v1923, %v1922
        %v1979 = vpack.c.bf16 %v1925, %v1924
        %v1980 = vpack.c.bf16 %v1927, %v1926
        %v1981 = vpack.c.bf16 %v1929, %v1928
        %v1982 = vpack.c.bf16 %v1931, %v1930
        %v1983 = vpack.c.bf16 %v1933, %v1932
        %v1984 = vpack.c.bf16 %v1935, %v1934
        %v1985 = vpack.c.bf16 %v1937, %v1936
        %v1986 = vpack.c.bf16 %v1939, %v1938
        %v1987 = vpack.c.bf16 %v1941, %v1940
        %v1988 = vpack.c.bf16 %v1943, %v1942
        %v1989 = vpack.c.bf16 %v1945, %v1944
        %v1990 = vpack.c.bf16 %v1947, %v1946
        %v1991 = vpack.c.bf16 %v1949, %v1948
        %v1992 = vpack.c.bf16 %v1951, %v1950
        %v1993 = vpack.c.bf16 %v1953, %v1952
        %v1994 = vpack.c.bf16 %v1955, %v1954
        %v1995 = vpack.c.bf16 %v1957, %v1956
        %v1996 = vpack.c.bf16 %v1959, %v1958
        %v1997 = vpack.c.bf16 %v1961, %v1960
        %v1998 = vpack.c.bf16 %v1963, %v1962
        %v1999 = vpack.c.bf16 %v1965, %v1964
        %v2000 = vpack.c.bf16 %v1967, %v1966
        %v2001 = vpack.c.bf16 %v1969, %v1968
        %v2034 = vunpack.c.l.b16 %v1970
        %v2035 = vunpack.c.h.b16 %v1970
        %v2036 = vunpack.c.l.b16 %v1971
        %v2037 = vunpack.c.h.b16 %v1971
        %v2038 = vunpack.c.l.b16 %v1972
        %v2039 = vunpack.c.h.b16 %v1972
        %v2040 = vunpack.c.l.b16 %v1973
        %v2041 = vunpack.c.h.b16 %v1973
        %v2042 = vunpack.c.l.b16 %v1974
        %v2043 = vunpack.c.h.b16 %v1974
        %v2044 = vunpack.c.l.b16 %v1975
        %v2045 = vunpack.c.h.b16 %v1975
        %v2046 = vunpack.c.l.b16 %v1976
        %v2047 = vunpack.c.h.b16 %v1976
        %v2048 = vunpack.c.l.b16 %v1977
        %v2049 = vunpack.c.h.b16 %v1977
        %v2050 = vunpack.c.l.b16 %v1978
        %v2051 = vunpack.c.h.b16 %v1978
        %v2052 = vunpack.c.l.b16 %v1979
        %v2053 = vunpack.c.h.b16 %v1979
        %v2054 = vunpack.c.l.b16 %v1980
        %v2055 = vunpack.c.h.b16 %v1980
        %v2056 = vunpack.c.l.b16 %v1981
        %v2057 = vunpack.c.h.b16 %v1981
        %v2058 = vunpack.c.l.b16 %v1982
        %v2059 = vunpack.c.h.b16 %v1982
        %v2060 = vunpack.c.l.b16 %v1983
        %v2061 = vunpack.c.h.b16 %v1983
        %v2062 = vunpack.c.l.b16 %v1984
        %v2063 = vunpack.c.h.b16 %v1984
        %v2064 = vunpack.c.l.b16 %v1985
        %v2065 = vunpack.c.h.b16 %v1985
        %v2066 = vunpack.c.l.b16 %v1986
        %v2067 = vunpack.c.h.b16 %v1986
        %v2068 = vunpack.c.l.b16 %v1987
        %v2069 = vunpack.c.h.b16 %v1987
        %v2070 = vunpack.c.l.b16 %v1988
        %v2071 = vunpack.c.h.b16 %v1988
        %v2072 = vunpack.c.l.b16 %v1989
        %v2073 = vunpack.c.h.b16 %v1989
        %v2074 = vunpack.c.l.b16 %v1990
        %v2075 = vunpack.c.h.b16 %v1990
        %v2076 = vunpack.c.l.b16 %v1991
        %v2077 = vunpack.c.h.b16 %v1991
        %v2078 = vunpack.c.l.b16 %v1992
        %v2079 = vunpack.c.h.b16 %v1992
        %v2080 = vunpack.c.l.b16 %v1993
        %v2081 = vunpack.c.h.b16 %v1993
        %v2082 = vunpack.c.l.b16 %v1994
        %v2083 = vunpack.c.h.b16 %v1994
        %v2084 = vunpack.c.l.b16 %v1995
        %v2085 = vunpack.c.h.b16 %v1995
        %v2086 = vunpack.c.l.b16 %v1996
        %v2087 = vunpack.c.h.b16 %v1996
        %v2088 = vunpack.c.l.b16 %v1997
        %v2089 = vunpack.c.h.b16 %v1997
        %v2090 = vunpack.c.l.b16 %v1998
        %v2091 = vunpack.c.h.b16 %v1998
        %v2092 = vunpack.c.l.b16 %v1999
        %v2093 = vunpack.c.h.b16 %v1999
        %v2094 = vunpack.c.l.b16 %v2000
        %v2095 = vunpack.c.h.b16 %v2000
        %v2096 = vunpack.c.l.b16 %v2001
        %v2097 = vunpack.c.h.b16 %v2001
        %v2098 = vpack.c.b16 %v2034, %v2034
        %v2099 = vpack.c.b16 %v2035, %v2035
        %v2100 = vpack.c.b16 %v2036, %v2036
        %v2101 = vpack.c.b16 %v2037, %v2037
        %v2102 = vpack.c.b16 %v2038, %v2038
        %v2103 = vpack.c.b16 %v2039, %v2039
        %v2104 = vpack.c.b16 %v2040, %v2040
        %v2105 = vpack.c.b16 %v2041, %v2041
        %v2106 = vpack.c.b16 %v2042, %v2042
        %v2107 = vpack.c.b16 %v2043, %v2043
        %v2108 = vpack.c.b16 %v2044, %v2044
        %v2109 = vpack.c.b16 %v2045, %v2045
        %v2110 = vpack.c.b16 %v2046, %v2046
        %v2111 = vpack.c.b16 %v2047, %v2047
        %v2112 = vpack.c.b16 %v2048, %v2048
        %v2113 = vpack.c.b16 %v2049, %v2049
        %v2114 = vpack.c.b16 %v2050, %v2050
        %v2115 = vpack.c.b16 %v2051, %v2051
        %v2116 = vpack.c.b16 %v2052, %v2052
        %v2117 = vpack.c.b16 %v2053, %v2053
        %v2118 = vpack.c.b16 %v2054, %v2054
        %v2119 = vpack.c.b16 %v2055, %v2055
        %v2120 = vpack.c.b16 %v2056, %v2056
        %v2121 = vpack.c.b16 %v2057, %v2057
        %v2122 = vpack.c.b16 %v2058, %v2058
        %v2123 = vpack.c.b16 %v2059, %v2059
        %v2124 = vpack.c.b16 %v2060, %v2060
        %v2125 = vpack.c.b16 %v2061, %v2061
        %v2126 = vpack.c.b16 %v2062, %v2062
        %v2127 = vpack.c.b16 %v2063, %v2063
        %v2128 = vpack.c.b16 %v2064, %v2064
        %v2129 = vpack.c.b16 %v2065, %v2065
        %v2130 = vpack.c.b16 %v2066, %v2066
        %v2131 = vpack.c.b16 %v2067, %v2067
        %v2132 = vpack.c.b16 %v2068, %v2068
        %v2133 = vpack.c.b16 %v2069, %v2069
        %v2134 = vpack.c.b16 %v2070, %v2070
        %v2135 = vpack.c.b16 %v2071, %v2071
        %v2136 = vpack.c.b16 %v2072, %v2072
        %v2137 = vpack.c.b16 %v2073, %v2073
        %v2138 = vpack.c.b16 %v2074, %v2074
        %v2139 = vpack.c.b16 %v2075, %v2075
        %v2140 = vpack.c.b16 %v2076, %v2076
        %v2141 = vpack.c.b16 %v2077, %v2077
        %v2142 = vpack.c.b16 %v2078, %v2078
        %v2143 = vpack.c.b16 %v2079, %v2079
        %v2144 = vpack.c.b16 %v2080, %v2080
        %v2145 = vpack.c.b16 %v2081, %v2081
        %v2146 = vpack.c.b16 %v2082, %v2082
        %v2147 = vpack.c.b16 %v2083, %v2083
        %v2148 = vpack.c.b16 %v2084, %v2084
        %v2149 = vpack.c.b16 %v2085, %v2085
        %v2150 = vpack.c.b16 %v2086, %v2086
        %v2151 = vpack.c.b16 %v2087, %v2087
        %v2152 = vpack.c.b16 %v2088, %v2088
        %v2153 = vpack.c.b16 %v2089, %v2089
        %v2154 = vpack.c.b16 %v2090, %v2090
        %v2155 = vpack.c.b16 %v2091, %v2091
        %v2156 = vpack.c.b16 %v2092, %v2092
        %v2157 = vpack.c.b16 %v2093, %v2093
        %v2158 = vpack.c.b16 %v2094, %v2094
        %v2159 = vpack.c.b16 %v2095, %v2095
        %v2160 = vpack.c.b16 %v2096, %v2096
        %v2161 = vpack.c.b16 %v2097, %v2097
        %2226 = vst [vmem:[%s272] sm:$0xf] %v2098
        %2227 = vst [vmem:[%s272 + $0x4] sm:$0xf] %v2099
        %2228 = vst [vmem:[%s272 + $0x8] sm:$0xf] %v2100
        %2229 = vst [vmem:[%s272 + $0xc] sm:$0xf] %v2101
        %2230 = vst [vmem:[%s272 + $0x10] sm:$0xf] %v2102
        %2231 = vst [vmem:[%s272 + $0x14] sm:$0xf] %v2103
        %2232 = vst [vmem:[%s272 + $0x18] sm:$0xf] %v2104
        %2233 = vst [vmem:[%s272 + $0x1c] sm:$0xf] %v2105
        %2234 = vst [vmem:[%s272 + $0x20] sm:$0xf] %v2106
        %2235 = vst [vmem:[%s272 + $0x24] sm:$0xf] %v2107
        %2236 = vst [vmem:[%s272 + $0x28] sm:$0xf] %v2108
        %2237 = vst [vmem:[%s272 + $0x2c] sm:$0xf] %v2109
        %2238 = vst [vmem:[%s272 + $0x30] sm:$0xf] %v2110
        %2239 = vst [vmem:[%s272 + $0x34] sm:$0xf] %v2111
        %2240 = vst [vmem:[%s272 + $0x38] sm:$0xf] %v2112
        %2241 = vst [vmem:[%s272 + $0x3c] sm:$0xf] %v2113
        %2242 = vst [vmem:[%s272 + $0x40] sm:$0xf] %v2114
        %2243 = vst [vmem:[%s272 + $0x44] sm:$0xf] %v2115
        %2244 = vst [vmem:[%s272 + $0x48] sm:$0xf] %v2116
        %2245 = vst [vmem:[%s272 + $0x4c] sm:$0xf] %v2117
        %2246 = vst [vmem:[%s272 + $0x50] sm:$0xf] %v2118
        %2247 = vst [vmem:[%s272 + $0x54] sm:$0xf] %v2119
        %2248 = vst [vmem:[%s272 + $0x58] sm:$0xf] %v2120
        %2249 = vst [vmem:[%s272 + $0x5c] sm:$0xf] %v2121
        %2250 = vst [vmem:[%s272 + $0x60] sm:$0xf] %v2122
        %2251 = vst [vmem:[%s272 + $0x64] sm:$0xf] %v2123
        %2252 = vst [vmem:[%s272 + $0x68] sm:$0xf] %v2124
        %2253 = vst [vmem:[%s272 + $0x6c] sm:$0xf] %v2125
        %2254 = vst [vmem:[%s272 + $0x70] sm:$0xf] %v2126
        %2255 = vst [vmem:[%s272 + $0x74] sm:$0xf] %v2127
        %2256 = vst [vmem:[%s272 + $0x78] sm:$0xf] %v2128
        %2257 = vst [vmem:[%s272 + $0x7c] sm:$0xf] %v2129
        %2258 = vst [vmem:[%s272 + $0x80] sm:$0xf] %v2130
        %2259 = vst [vmem:[%s272 + $0x84] sm:$0xf] %v2131
        %2260 = vst [vmem:[%s272 + $0x88] sm:$0xf] %v2132
        %2261 = vst [vmem:[%s272 + $0x8c] sm:$0xf] %v2133
        %2262 = vst [vmem:[%s272 + $0x90] sm:$0xf] %v2134
        %2263 = vst [vmem:[%s272 + $0x94] sm:$0xf] %v2135
        %2264 = vst [vmem:[%s272 + $0x98] sm:$0xf] %v2136
        %2265 = vst [vmem:[%s272 + $0x9c] sm:$0xf] %v2137
        %2266 = vst [vmem:[%s272 + $0xa0] sm:$0xf] %v2138
        %2267 = vst [vmem:[%s272 + $0xa4] sm:$0xf] %v2139
        %2268 = vst [vmem:[%s272 + $0xa8] sm:$0xf] %v2140
        %2269 = vst [vmem:[%s272 + $0xac] sm:$0xf] %v2141
        %2270 = vst [vmem:[%s272 + $0xb0] sm:$0xf] %v2142
        %2271 = vst [vmem:[%s272 + $0xb4] sm:$0xf] %v2143
        %2272 = vst [vmem:[%s272 + $0xb8] sm:$0xf] %v2144
        %2273 = vst [vmem:[%s272 + $0xbc] sm:$0xf] %v2145
        %2274 = vst [vmem:[%s272 + $0xc0] sm:$0xf] %v2146
        %2275 = vst [vmem:[%s272 + $0xc4] sm:$0xf] %v2147
        %2276 = vst [vmem:[%s272 + $0xc8] sm:$0xf] %v2148
        %2277 = vst [vmem:[%s272 + $0xcc] sm:$0xf] %v2149
        %2278 = vst [vmem:[%s272 + $0xd0] sm:$0xf] %v2150
        %2279 = vst [vmem:[%s272 + $0xd4] sm:$0xf] %v2151
        %2280 = vst [vmem:[%s272 + $0xd8] sm:$0xf] %v2152
        %2281 = vst [vmem:[%s272 + $0xdc] sm:$0xf] %v2153
        %2282 = vst [vmem:[%s272 + $0xe0] sm:$0xf] %v2154
        %2283 = vst [vmem:[%s272 + $0xe4] sm:$0xf] %v2155
        %2284 = vst [vmem:[%s272 + $0xe8] sm:$0xf] %v2156
        %2285 = vst [vmem:[%s272 + $0xec] sm:$0xf] %v2157
        %2286 = vst [vmem:[%s272 + $0xf0] sm:$0xf] %v2158
        %2287 = vst [vmem:[%s272 + $0xf4] sm:$0xf] %v2159
        %2288 = vst [vmem:[%s272 + $0xf8] sm:$0xf] %v2160
        %2289 = vst [vmem:[%s272 + $0xfc] sm:$0xf] %v2161
        %s2290 = sand.u32 %s181, 1
        %s2291 = scalar_lea.sflag [#allocation3], %s2290
        %s2292 = sand.u32 %s181, 1
        %s2293 = smul.addr %s2292, 256
        %s2294 = scalar_lea.vmem [#allocation2], %s2293
        // Predicated region
        $region49: #{tpu_custom_call.1} parent=47 // pred_check
          %p2295 = pneg %p191
        $region50: #{tpu_custom_call.1} parent=47 // pred_check_branch
          %2297 = sbr.rel (%p2295) target = $region52
        $region51: #{tpu_custom_call.1} parent=47 // pred_region
          %s2298 = smul.u32 64, %s21
          %s2300 = ssub.s32 4096, 4096
          %2301 = vsyncadd %s2291, %s2300
          %s2302 = smul.addr %s2298, 64
          %s2303 = scalar_lea.hbm %s7, %s2302
          %s2304 = sshll.u32 %s2294, 4
          %s2305 = int_to_ptr.vmem [resolvable:$true] %s2304
          %2310 = dma.vmem_to_hbm [thread:$0]  %s2305, 4096, %s2303, %s2291, 64, 64, 4
        $region52: #{tpu_custom_call.1} parent=47 // pred_fallthru
          _
      $region48: #{tpu_custom_call.1} parent=5 // pred_fallthru
        _
      %p2311 = scmp.le.s32.totalorder 2, %s16
      // Predicated region
      $region53: #{tpu_custom_call.1} parent=5 // pred_check
        %p2312 = pneg %p2311
      $region54: #{tpu_custom_call.1} parent=5 // pred_check_branch
        %2314 = sbr.rel (%p2312) target = $region56
      $region55: #{tpu_custom_call.1} parent=5 // pred_region
        %s2315 = ssub.s32 %s16, 2
        // Predicated region
        $region57: #{tpu_custom_call.1} parent=55 // pred_check
          %p2316 = pneg %p197
        $region58: #{tpu_custom_call.1} parent=55 // pred_check_branch
          %2318 = sbr.rel (%p2316) target = $region60
        $region59: #{tpu_custom_call.1} parent=55 // pred_region
          %s2319 = sand.u32 %s182, 1
          %s2320 = scalar_lea.sflag [#allocation3], %s2319
          %s2321 = sand.u32 %s182, 1
          %s2322 = smul.addr %s2321, 256
          %s2323 = scalar_lea.vmem [#allocation2], %s2322
          %2324 = dma.done %s2320, 4096
        $region60: #{tpu_custom_call.1} parent=55 // pred_fallthru
          _
      $region56: #{tpu_custom_call.1} parent=5 // pred_fallthru
        _
    $region6: #{tpu_custom_call.1} parent=1 // loop_footer
      %s20 = sadd.s32 1, %s16
    $region7: #{tpu_custom_call.1} parent=1 // loop_footer_branch
      %15 = sbr.rel target = $region3
    $region8: #{tpu_custom_call.1} parent=1 // loop_exit
      _
    %2325 = vsyncpa [#allocation3], 1
    %s2326 = scalar_lea.sflag [#allocation3], 1
    %2327 = vsyncpa %s2326, 1

</llo_original>
